<compile_context>
chip_gen: v6e
topology: v6e:2x2x1
jax: 0.10.0
libtpu: 0.0.40
codegen_flags: <defaults>
</compile_context>

<pallas_src>
import functools
import math

import jax
import jax.numpy as jnp
from jax import lax
from jax.experimental import pallas as pl
from jax.experimental.pallas import tpu as pltpu


# ----------------------------------------------------------------------------
# Sampling + radius grouping (data-dependent index ops, plain JAX)
# ----------------------------------------------------------------------------
def fps_sample_batched(pos_b, n_samples):
    """Farthest point sampling per cloud. pos_b: (B, n, 3) -> (B, n_samples) local idx.

    # TODO(synk): assumes equal-size, contiguous point clouds (true for the
    # example / typical ModelNet batching); ragged batches need a segment FPS.
    """
    def one_cloud(pts):
        n = pts.shape[0]
        d = jnp.sum((pts - pts[0]) ** 2, axis=-1)
        sel0 = jnp.zeros((n_samples,), jnp.int32)

        def body(i, carry):
            sel, d = carry
            nxt = jnp.argmax(d).astype(jnp.int32)
            sel = sel.at[i].set(nxt)
            d = jnp.minimum(d, jnp.sum((pts - pts[nxt]) ** 2, axis=-1))
            return sel, d

        sel, _ = lax.fori_loop(1, n_samples, body, (sel0, d))
        return sel

    return jax.vmap(one_cloud)(pos_b)


def radius_group(pos, batch, centroid_idx, r, k):
    """For each centroid pick up to k neighbours within radius r (same batch)."""
    cpos = pos[centroid_idx]                       # (M, 3)
    cbatch = batch[centroid_idx]                   # (M,)
    d2 = jnp.sum((cpos[:, None, :] - pos[None, :, :]) ** 2, axis=-1)   # (M, N)
    valid = (d2 <= r * r) & (cbatch[:, None] == batch[None, :])
    key = jnp.where(valid, d2, jnp.inf)
    neg_d, neigh_idx = lax.top_k(-key, k)          # k closest valid neighbours
    neigh_valid = jnp.isfinite(neg_d)              # (M, k)
    return neigh_idx, neigh_valid


# ----------------------------------------------------------------------------
# Pallas kernel: shared MLP over flattened grouped edges + masked max aggregation
# ----------------------------------------------------------------------------
def pointnet_conv_kernel(feat_ref, mask_ref, w1_ref, b1_ref, w2_ref, b2_ref, o_ref):
    # feat_ref: (tm*K, Din) bf16   mask_ref: (tm*K, 1) f32
    # w1: (Din, Hp) bf16  b1: (1, Hp) f32  w2: (Hp, Dp) bf16  b2: (1, Dp) f32
    # o_ref: (tm, Dp) f32  (Hp, Dp are multiples of 128 -> lane-dense stores)
    rows = feat_ref.shape[0]
    tm, dp = o_ref.shape
    k = rows // tm

    # layer 1: MXU matmul (f32 acc) + bias + ReLU
    h = jnp.dot(feat_ref[...], w1_ref[...], preferred_element_type=jnp.float32)
    h = jnp.maximum(h + b1_ref[...], 0.0)
    # layer 2: back to bf16 for the MXU, f32 accumulation again
    h = h.astype(w2_ref.dtype)
    h = jnp.dot(h, w2_ref[...], preferred_element_type=jnp.float32)
    h = jnp.maximum(h + b2_ref[...], 0.0)            # (tm*K, Dp), all >= 0

    # Zero invalid neighbour rows.  The MLP ends with a ReLU (values >= 0) and
    # every centroid keeps itself as a neighbour (distance 0 <= r), so a zeroed
    # row can never win the max -> multiplicative masking == -inf masking.
    h = h * mask_ref[...]
    # group max: reshape only splits the sublane dim (layout preserving)
    o_ref[...] = jnp.max(h.reshape(tm, k, dp), axis=1)


def pointnet_conv(feat_flat, mask_flat, w1, b1, w2, b2, *, k, tm):
    mk, din = feat_flat.shape
    m = mk // k
    hp = w1.shape[1]
    dp = w2.shape[1]
    assert m % tm == 0  # caller pads M to a multiple of tm
    n_steps = m // tm

    # advisory cost estimate for the XLA scheduler
    flops = 2 * mk * (din * hp + hp * dp)
    bytes_accessed = (
        feat_flat.size * 2 + mask_flat.size * 4
        + (w1.size + w2.size) * 2 + (b1.size + b2.size) * 4
        + m * dp * 4
    )
    cost = pl.CostEstimate(flops=flops, transcendentals=0,
                           bytes_accessed=bytes_accessed)

    return pl.pallas_call(
        pointnet_conv_kernel,
        out_shape=jax.ShapeDtypeStruct((m, dp), jnp.float32),
        grid_spec=pltpu.PrefetchScalarGridSpec(
            num_scalar_prefetch=0,
            grid=(n_steps,),
            in_specs=[
                pl.BlockSpec((tm * k, din), lambda i: (i, 0)),
                pl.BlockSpec((tm * k, 1), lambda i: (i, 0)),
                # weights/biases: same block every step -> stay VMEM resident
                pl.BlockSpec((din, hp), lambda i: (0, 0)),
                pl.BlockSpec((1, hp), lambda i: (0, 0)),
                pl.BlockSpec((hp, dp), lambda i: (0, 0)),
                pl.BlockSpec((1, dp), lambda i: (0, 0)),
            ],
            out_specs=pl.BlockSpec((tm, dp), lambda i: (i, 0)),
        ),
        compiler_params=pltpu.CompilerParams(
            dimension_semantics=("parallel",),
            vmem_limit_bytes=64 * 1024 * 1024,
        ),
        cost_estimate=cost,
    )(feat_flat, mask_flat, w1, b1, w2, b2)


# ----------------------------------------------------------------------------
# SAModule forward
# ----------------------------------------------------------------------------
def sa_module_forward(x, pos, batch, params, *, ratio, r, k, n_per_cloud):
    n = pos.shape[0]
    n_clouds = n // n_per_cloud

    # 1. sampling (jittable FPS, on device)
    n_samples = int(math.ceil(ratio * n_per_cloud))
    local_idx = fps_sample_batched(pos.reshape(n_clouds, n_per_cloud, 3), n_samples)
    offsets = (jnp.arange(n_clouds, dtype=jnp.int32) * n_per_cloud)[:, None]
    idx = (local_idx + offsets).reshape(-1)                            # (M,)

    # 2. radius grouping (up to k neighbours per centroid)
    neigh_idx, neigh_valid = radius_group(pos, batch, idx, r, k)       # (M, k)

    # edge features [x_j, pos_j - pos_i]
    cpos = pos[idx]                                                    # (M, 3)
    x_j = x[neigh_idx]                                                 # (M, k, C)
    rel = pos[neigh_idx] - cpos[:, None, :]                            # (M, k, 3)
    feat = jnp.concatenate([x_j, rel], axis=-1)                        # (M, k, C+3)
    feat = jnp.where(neigh_valid[:, :, None], feat, 0.0)

    m = feat.shape[0]
    c_edge = feat.shape[-1]
    h_dim = params["w1"].shape[1]
    d_out = params["w2"].shape[1]

    # pad channel dims: Din -> mult of 8, Hidden/Dout -> mult of 128 (lane-dense)
    din = ((c_edge + 7) // 8) * 8
    hp = 128 * pl.cdiv(h_dim, 128)
    dp = 128 * pl.cdiv(d_out, 128)
    w1p = jnp.pad(params["w1"], ((0, din - c_edge), (0, hp - h_dim))).astype(jnp.bfloat16)
    b1p = jnp.pad(params["b1"], ((0, 0), (0, hp - h_dim))).astype(jnp.float32)
    w2p = jnp.pad(params["w2"], ((0, hp - h_dim), (0, dp - d_out))).astype(jnp.bfloat16)
    b2p = jnp.pad(params["b2"], ((0, 0), (0, dp - d_out))).astype(jnp.float32)

    # tile / pad centroid rows: <=128 centroids per grid step, M padded to tm
    tm = min(128, ((m + 7) // 8) * 8)
    m_pad = tm * pl.cdiv(m, tm)
    if din > c_edge:
        feat = jnp.pad(feat, ((0, 0), (0, 0), (0, din - c_edge)))
    if m_pad > m:
        feat = jnp.pad(feat, ((0, m_pad - m), (0, 0), (0, 0)))
        neigh_valid = jnp.pad(neigh_valid, ((0, m_pad - m), (0, 0)))

    feat_flat = feat.reshape(m_pad * k, din).astype(jnp.bfloat16)      # (M*K, Din)
    mask_flat = neigh_valid.reshape(m_pad * k, 1).astype(jnp.float32)  # (M*K, 1)

    # 3. PointNet layer (Pallas kernel), slice padding back off
    out_pad = pointnet_conv(feat_flat, mask_flat, w1p, b1p, w2p, b2p, k=k, tm=tm)
    out = out_pad[:m, :d_out]
    return out, pos[idx], batch[idx]


# ----------------------------------------------------------------------------
# Main
# ----------------------------------------------------------------------------
if __name__ == "__main__":
    N_PER_CLOUD = 32
    N_CLOUDS = 2
    N = N_PER_CLOUD * N_CLOUDS          # 64 points total
    C_IN = 4                            # input feature channels
    RATIO = 0.5                         # -> M = 32 centroids
    RADIUS = 0.6
    K = 16                              # max neighbours per centroid
    HIDDEN = 32
    D_OUT = 32

    key = jax.random.PRNGKey(0)
    kx, kp, kw1, kw2 = jax.random.split(key, 4)

    x = jax.random.normal(kx, (N, C_IN), dtype=jnp.float32)
    pos = jax.random.uniform(kp, (N, 3), dtype=jnp.float32)
    batch = jnp.repeat(jnp.arange(N_CLOUDS, dtype=jnp.int32), N_PER_CLOUD)

    # shared-MLP parameters of PointNetConv's local_nn (true, un-padded shapes)
    w1 = jax.random.normal(kw1, (C_IN + 3, HIDDEN), dtype=jnp.float32) * 0.1
    b1 = jnp.zeros((1, HIDDEN), dtype=jnp.float32)
    w2 = jax.random.normal(kw2, (HIDDEN, D_OUT), dtype=jnp.float32) * 0.1
    b2 = jnp.zeros((1, D_OUT), dtype=jnp.float32)
    params = {"w1": w1, "b1": b1, "w2": w2, "b2": b2}

    fwd = jax.jit(functools.partial(
        sa_module_forward, ratio=RATIO, r=RADIUS, k=K, n_per_cloud=N_PER_CLOUD))
    out_x, out_pos, out_batch = fwd(x, pos, batch, params)
    jax.block_until_ready((out_x, out_pos, out_batch))

    M = N_CLOUDS * int(math.ceil(RATIO * N_PER_CLOUD))
    assert out_x.shape == (M, D_OUT)
    assert out_pos.shape == (M, 3)
    assert out_batch.shape == (M,)
    assert bool(jnp.all(jnp.isfinite(out_x)))
    print("KERNEL_OK")
</pallas_src>

<mosaic_0001>
module attributes {stable_mosaic.version = 11 : i64} {
  func.func @pointnet_conv_kernel(%arg0: i32, %arg1: memref<512x8xbf16, #tpu.memory_space<vmem>>, %arg2: memref<512x1xf32, #tpu.memory_space<vmem>>, %arg3: memref<8x128xbf16, #tpu.memory_space<vmem>>, %arg4: memref<1x128xf32, #tpu.memory_space<vmem>>, %arg5: memref<128x128xbf16, #tpu.memory_space<vmem>>, %arg6: memref<1x128xf32, #tpu.memory_space<vmem>>, %arg7: memref<32x128xf32, #tpu.memory_space<vmem>>) attributes {dimension_semantics = [#tpu.dimension_semantics<parallel>], iteration_bounds = array<i64: 1>, scalar_prefetch = 0 : i64, scratch_operands = 0 : i64, tpu.core_type = #tpu.core_type<tc>, window_params = [{transform_indices = @transform_0, window_bounds = array<i64: 512, 8>}, {transform_indices = @transform_1, window_bounds = array<i64: 512, 1>}, {pipeline_mode = #tpu.pipeline_mode<synchronous>, transform_indices = @transform_2, window_bounds = array<i64: 8, 128>}, {pipeline_mode = #tpu.pipeline_mode<synchronous>, transform_indices = @transform_3, window_bounds = array<i64: 1, 128>}, {pipeline_mode = #tpu.pipeline_mode<synchronous>, transform_indices = @transform_4, window_bounds = array<i64: 128, 128>}, {pipeline_mode = #tpu.pipeline_mode<synchronous>, transform_indices = @transform_5, window_bounds = array<i64: 1, 128>}, {transform_indices = @transform_6, window_bounds = array<i64: 32, 128>}]} {
    %c0 = arith.constant 0 : index
    %c0_0 = arith.constant 0 : index
    %0 = vector.load %arg1[%c0, %c0_0] : memref<512x8xbf16, #tpu.memory_space<vmem>>, vector<512x8xbf16>
    %c0_1 = arith.constant 0 : index
    %c0_2 = arith.constant 0 : index
    %1 = vector.load %arg3[%c0_1, %c0_2] : memref<8x128xbf16, #tpu.memory_space<vmem>>, vector<8x128xbf16>
    %cst = arith.constant dense<0.000000e+00> : vector<512x128xf32>
    %2 = tpu.matmul %0, %1, %cst {dimension_numbers = #tpu.dot_dimension_numbers<[1], [0], [0], [1], [0, 0, 1, 1], [], []>} : vector<512x8xbf16>, vector<8x128xbf16>, vector<512x128xf32> -> vector<512x128xf32>
    %c0_3 = arith.constant 0 : index
    %c0_4 = arith.constant 0 : index
    %3 = vector.load %arg4[%c0_3, %c0_4] : memref<1x128xf32, #tpu.memory_space<vmem>>, vector<1x128xf32>
    %4 = vector.broadcast %3 : vector<1x128xf32> to vector<512x128xf32>
    %5 = arith.addf %2, %4 : vector<512x128xf32>
    %cst_5 = arith.constant 0.000000e+00 : f32
    %6 = vector.broadcast %cst_5 : f32 to vector<512x128xf32>
    %7 = arith.maximumf %5, %6 : vector<512x128xf32>
    %8 = arith.truncf %7 : vector<512x128xf32> to vector<512x128xbf16>
    %c0_6 = arith.constant 0 : index
    %c0_7 = arith.constant 0 : index
    %9 = vector.load %arg5[%c0_6, %c0_7] : memref<128x128xbf16, #tpu.memory_space<vmem>>, vector<128x128xbf16>
    %cst_8 = arith.constant dense<0.000000e+00> : vector<512x128xf32>
    %10 = tpu.matmul %8, %9, %cst_8 {dimension_numbers = #tpu.dot_dimension_numbers<[1], [0], [0], [1], [0, 0, 1, 1], [], []>} : vector<512x128xbf16>, vector<128x128xbf16>, vector<512x128xf32> -> vector<512x128xf32>
    %c0_9 = arith.constant 0 : index
    %c0_10 = arith.constant 0 : index
    %11 = vector.load %arg6[%c0_9, %c0_10] : memref<1x128xf32, #tpu.memory_space<vmem>>, vector<1x128xf32>
    %12 = vector.broadcast %11 : vector<1x128xf32> to vector<512x128xf32>
    %13 = arith.addf %10, %12 : vector<512x128xf32>
    %cst_11 = arith.constant 0.000000e+00 : f32
    %14 = vector.broadcast %cst_11 : f32 to vector<512x128xf32>
    %15 = arith.maximumf %13, %14 : vector<512x128xf32>
    %c0_12 = arith.constant 0 : index
    %c0_13 = arith.constant 0 : index
    %16 = vector.load %arg2[%c0_12, %c0_13] : memref<512x1xf32, #tpu.memory_space<vmem>>, vector<512x1xf32>
    %17 = vector.broadcast %16 : vector<512x1xf32> to vector<512x128xf32>
    %18 = arith.mulf %15, %17 : vector<512x128xf32>
    %19 = vector.shape_cast %18 : vector<512x128xf32> to vector<32x16x128xf32>
    %cst_14 = arith.constant dense<0xFF800000> : vector<32x128xf32>
    %20 = vector.multi_reduction <maximumf>, %19, %cst_14 [1] : vector<32x16x128xf32> to vector<32x128xf32>
    %c0_15 = arith.constant 0 : index
    %c0_16 = arith.constant 0 : index
    %21 = vector.load %arg7[%c0_15, %c0_16] : memref<32x128xf32, #tpu.memory_space<vmem>>, vector<32x128xf32>
    tpu.vector_store %arg7[%c0_15, %c0_16], %20 {strides = array<i32>} : memref<32x128xf32, #tpu.memory_space<vmem>>, vector<32x128xf32>,
    return
  }
  func.func @transform_0(%arg0: i32) -> (i32, i32) {
    %c0_i32 = arith.constant 0 : i32
    %c0_i32_0 = arith.constant 0 : i32
    return %arg0, %c0_i32 : i32, i32
  }
  func.func @transform_1(%arg0: i32) -> (i32, i32) {
    %c0_i32 = arith.constant 0 : i32
    %c0_i32_0 = arith.constant 0 : i32
    return %arg0, %c0_i32 : i32, i32
  }
  func.func @transform_2(%arg0: i32) -> (i32, i32) {
    %c0_i32 = arith.constant 0 : i32
    %c0_i32_0 = arith.constant 0 : i32
    %c0_i32_1 = arith.constant 0 : i32
    return %c0_i32, %c0_i32_0 : i32, i32
  }
  func.func @transform_3(%arg0: i32) -> (i32, i32) {
    %c0_i32 = arith.constant 0 : i32
    %c0_i32_0 = arith.constant 0 : i32
    %c0_i32_1 = arith.constant 0 : i32
    return %c0_i32, %c0_i32_0 : i32, i32
  }
  func.func @transform_4(%arg0: i32) -> (i32, i32) {
    %c0_i32 = arith.constant 0 : i32
    %c0_i32_0 = arith.constant 0 : i32
    %c0_i32_1 = arith.constant 0 : i32
    return %c0_i32, %c0_i32_0 : i32, i32
  }
  func.func @transform_5(%arg0: i32) -> (i32, i32) {
    %c0_i32 = arith.constant 0 : i32
    %c0_i32_0 = arith.constant 0 : i32
    %c0_i32_1 = arith.constant 0 : i32
    return %c0_i32, %c0_i32_0 : i32, i32
  }
  func.func @transform_6(%arg0: i32) -> (i32, i32) {
    %c0_i32 = arith.constant 0 : i32
    %c0_i32_0 = arith.constant 0 : i32
    return %arg0, %c0_i32 : i32, i32
  }
}

</mosaic_0001>

<llo_original>
// kernel: sa_module_forward.1
$region0: #{sa_module_forward.1}
  #allocation0 [shape = 'u32[]', space=smem, size = 0x4, offset = 0x4, fixed_abs, tag = 'smem constant byte address 0x4 - core index']
  #allocation1 [shape = 'u32[144,128]{1,0:T(1,128)}', space=vmem, size = 0x12000, scoped, tag = 'internal scratch']
  %s0 = inlined_call_operand.vmem [shape: bf16[512,8], index: 0, kind: input, shape index: {}]
  %s1 = inlined_call_operand.vmem [shape: f32[512,1], index: 1, kind: input, shape index: {}]
  %s2 = inlined_call_operand.vmem [shape: bf16[8,128], index: 2, kind: input, shape index: {}]
  %s3 = inlined_call_operand.vmem [shape: f32[1,128], index: 3, kind: input, shape index: {}]
  %s4 = inlined_call_operand.vmem [shape: bf16[128,128], index: 4, kind: input, shape index: {}]
  %s5 = inlined_call_operand.vmem [shape: f32[1,128], index: 5, kind: input, shape index: {}]
  %s6 = inlined_call_operand.hbm [shape: f32[32,128], index: 6, kind: output, shape index: {}]
  %s7 = sld [smem:[#allocation0]]
  $region34: #{sa_module_forward.1} parent=0
    _
  %s9 = ssub.s32 1, %s7
  %s10 = scalar_select 0, %s9, %s7
  $region1: #{sa_module_forward.1} parent=0
    #allocation2 [shape = 'u8[16384]{0}', space=vmem, size = 0x4000, scoped, tag = 'output window, operand 0, single buffered']
    #allocation3 [shape = 's32[1]{0}', space=sflag, size = 0x4, scoped, tag = 'scoped memory for sa_module_forward.1']
    %11 = vsyncpa [#allocation3], 0
    // Predicated region
    $region2: #{sa_module_forward.1} parent=1 // pred_check
      _
    $region3: #{sa_module_forward.1} parent=1 // pred_check_branch
      %13 = sbr.rel (0) target = $region5
    $region4: #{sa_module_forward.1} parent=1 // pred_region
      _
    $region5: #{sa_module_forward.1} parent=1 // pred_fallthru
      _
    // Predicated region
    $region6: #{sa_module_forward.1} parent=1 // pred_check
      _
    $region7: #{sa_module_forward.1} parent=1 // pred_check_branch
      %15 = sbr.rel (0) target = $region9
    $region8: #{sa_module_forward.1} parent=1 // pred_region
      _
    $region9: #{sa_module_forward.1} parent=1 // pred_fallthru
      _
    // Predicated region
    $region10: #{sa_module_forward.1} parent=1 // pred_check
      _
    $region11: #{sa_module_forward.1} parent=1 // pred_check_branch
      %17 = sbr.rel (0) target = $region13
    $region12: #{sa_module_forward.1} parent=1 // pred_region
      _
    $region13: #{sa_module_forward.1} parent=1 // pred_fallthru
      _
    // Predicated region
    $region14: #{sa_module_forward.1} parent=1 // pred_check
      _
    $region15: #{sa_module_forward.1} parent=1 // pred_check_branch
      %19 = sbr.rel (0) target = $region17
    $region16: #{sa_module_forward.1} parent=1 // pred_region
      _
    $region17: #{sa_module_forward.1} parent=1 // pred_fallthru
      _
    // Predicated region
    $region18: #{sa_module_forward.1} parent=1 // pred_check
      _
    $region19: #{sa_module_forward.1} parent=1 // pred_check_branch
      %21 = sbr.rel (0) target = $region21
    $region20: #{sa_module_forward.1} parent=1 // pred_region
      _
    $region21: #{sa_module_forward.1} parent=1 // pred_fallthru
      _
    // Predicated region
    $region22: #{sa_module_forward.1} parent=1 // pred_check
      _
    $region23: #{sa_module_forward.1} parent=1 // pred_check_branch
      %23 = sbr.rel (0) target = $region25
    $region24: #{sa_module_forward.1} parent=1 // pred_region
      _
    $region25: #{sa_module_forward.1} parent=1 // pred_fallthru
      _
    %v25 = vld [vmem:[%s0] sm:$0xf]
    %v26 = vld [vmem:[%s0 + $0x4] sm:$0xf]
    %v27 = vld [vmem:[%s0 + $0x8] sm:$0xf]
    %v28 = vld [vmem:[%s0 + $0xc] sm:$0xf]
    %v29 = vld [vmem:[%s0 + $0x10] sm:$0xf]
    %v30 = vld [vmem:[%s0 + $0x14] sm:$0xf]
    %v31 = vld [vmem:[%s0 + $0x18] sm:$0xf]
    %v32 = vld [vmem:[%s0 + $0x1c] sm:$0xf]
    %v33 = vld [vmem:[%s0 + $0x20] sm:$0xf]
    %v34 = vld [vmem:[%s0 + $0x24] sm:$0xf]
    %v35 = vld [vmem:[%s0 + $0x28] sm:$0xf]
    %v36 = vld [vmem:[%s0 + $0x2c] sm:$0xf]
    %v37 = vld [vmem:[%s0 + $0x30] sm:$0xf]
    %v38 = vld [vmem:[%s0 + $0x34] sm:$0xf]
    %v39 = vld [vmem:[%s0 + $0x38] sm:$0xf]
    %v40 = vld [vmem:[%s0 + $0x3c] sm:$0xf]
    %v41 = vld [vmem:[%s0 + $0x40] sm:$0xf]
    %v42 = vld [vmem:[%s0 + $0x44] sm:$0xf]
    %v43 = vld [vmem:[%s0 + $0x48] sm:$0xf]
    %v44 = vld [vmem:[%s0 + $0x4c] sm:$0xf]
    %v45 = vld [vmem:[%s0 + $0x50] sm:$0xf]
    %v46 = vld [vmem:[%s0 + $0x54] sm:$0xf]
    %v47 = vld [vmem:[%s0 + $0x58] sm:$0xf]
    %v48 = vld [vmem:[%s0 + $0x5c] sm:$0xf]
    %v49 = vld [vmem:[%s0 + $0x60] sm:$0xf]
    %v50 = vld [vmem:[%s0 + $0x64] sm:$0xf]
    %v51 = vld [vmem:[%s0 + $0x68] sm:$0xf]
    %v52 = vld [vmem:[%s0 + $0x6c] sm:$0xf]
    %v53 = vld [vmem:[%s0 + $0x70] sm:$0xf]
    %v54 = vld [vmem:[%s0 + $0x74] sm:$0xf]
    %v55 = vld [vmem:[%s0 + $0x78] sm:$0xf]
    %v56 = vld [vmem:[%s0 + $0x7c] sm:$0xf]
    %v57 = vld [vmem:[%s0 + $0x80] sm:$0xf]
    %v58 = vld [vmem:[%s0 + $0x84] sm:$0xf]
    %v59 = vld [vmem:[%s0 + $0x88] sm:$0xf]
    %v60 = vld [vmem:[%s0 + $0x8c] sm:$0xf]
    %v61 = vld [vmem:[%s0 + $0x90] sm:$0xf]
    %v62 = vld [vmem:[%s0 + $0x94] sm:$0xf]
    %v63 = vld [vmem:[%s0 + $0x98] sm:$0xf]
    %v64 = vld [vmem:[%s0 + $0x9c] sm:$0xf]
    %v65 = vld [vmem:[%s0 + $0xa0] sm:$0xf]
    %v66 = vld [vmem:[%s0 + $0xa4] sm:$0xf]
    %v67 = vld [vmem:[%s0 + $0xa8] sm:$0xf]
    %v68 = vld [vmem:[%s0 + $0xac] sm:$0xf]
    %v69 = vld [vmem:[%s0 + $0xb0] sm:$0xf]
    %v70 = vld [vmem:[%s0 + $0xb4] sm:$0xf]
    %v71 = vld [vmem:[%s0 + $0xb8] sm:$0xf]
    %v72 = vld [vmem:[%s0 + $0xbc] sm:$0xf]
    %v73 = vld [vmem:[%s0 + $0xc0] sm:$0xf]
    %v74 = vld [vmem:[%s0 + $0xc4] sm:$0xf]
    %v75 = vld [vmem:[%s0 + $0xc8] sm:$0xf]
    %v76 = vld [vmem:[%s0 + $0xcc] sm:$0xf]
    %v77 = vld [vmem:[%s0 + $0xd0] sm:$0xf]
    %v78 = vld [vmem:[%s0 + $0xd4] sm:$0xf]
    %v79 = vld [vmem:[%s0 + $0xd8] sm:$0xf]
    %v80 = vld [vmem:[%s0 + $0xdc] sm:$0xf]
    %v81 = vld [vmem:[%s0 + $0xe0] sm:$0xf]
    %v82 = vld [vmem:[%s0 + $0xe4] sm:$0xf]
    %v83 = vld [vmem:[%s0 + $0xe8] sm:$0xf]
    %v84 = vld [vmem:[%s0 + $0xec] sm:$0xf]
    %v85 = vld [vmem:[%s0 + $0xf0] sm:$0xf]
    %v86 = vld [vmem:[%s0 + $0xf4] sm:$0xf]
    %v87 = vld [vmem:[%s0 + $0xf8] sm:$0xf]
    %v88 = vld [vmem:[%s0 + $0xfc] sm:$0xf]
    %v89 = vld [vmem:[%s2] sm:$0xf]
    %v90 = vld [vmem:[%s3] sm:$0x1]
    %v92 = vlaneseq
    %v93 = vshrl.u32 %v92, 7
    %v94 = vsub.s32 0, %v93
    %v95 = vrot.slane %v90, %v94
    %v161 = vunpack.c.l.b16 %v25
    %v162 = vunpack.c.l.b16 %v26
    %v163 = vunpack.c.l.b16 %v27
    %v164 = vunpack.c.l.b16 %v28
    %v165 = vunpack.c.l.b16 %v29
    %v166 = vunpack.c.l.b16 %v30
    %v167 = vunpack.c.l.b16 %v31
    %v168 = vunpack.c.l.b16 %v32
    %v169 = vunpack.c.l.b16 %v33
    %v170 = vunpack.c.l.b16 %v34
    %v171 = vunpack.c.l.b16 %v35
    %v172 = vunpack.c.l.b16 %v36
    %v173 = vunpack.c.l.b16 %v37
    %v174 = vunpack.c.l.b16 %v38
    %v175 = vunpack.c.l.b16 %v39
    %v176 = vunpack.c.l.b16 %v40
    %v177 = vunpack.c.l.b16 %v41
    %v178 = vunpack.c.l.b16 %v42
    %v179 = vunpack.c.l.b16 %v43
    %v180 = vunpack.c.l.b16 %v44
    %v181 = vunpack.c.l.b16 %v45
    %v182 = vunpack.c.l.b16 %v46
    %v183 = vunpack.c.l.b16 %v47
    %v184 = vunpack.c.l.b16 %v48
    %v185 = vunpack.c.l.b16 %v49
    %v186 = vunpack.c.l.b16 %v50
    %v187 = vunpack.c.l.b16 %v51
    %v188 = vunpack.c.l.b16 %v52
    %v189 = vunpack.c.l.b16 %v53
    %v190 = vunpack.c.l.b16 %v54
    %v191 = vunpack.c.l.b16 %v55
    %v192 = vunpack.c.l.b16 %v56
    %v193 = vunpack.c.l.b16 %v57
    %v194 = vunpack.c.l.b16 %v58
    %v195 = vunpack.c.l.b16 %v59
    %v196 = vunpack.c.l.b16 %v60
    %v197 = vunpack.c.l.b16 %v61
    %v198 = vunpack.c.l.b16 %v62
    %v199 = vunpack.c.l.b16 %v63
    %v200 = vunpack.c.l.b16 %v64
    %v201 = vunpack.c.l.b16 %v65
    %v202 = vunpack.c.l.b16 %v66
    %v203 = vunpack.c.l.b16 %v67
    %v204 = vunpack.c.l.b16 %v68
    %v205 = vunpack.c.l.b16 %v69
    %v206 = vunpack.c.l.b16 %v70
    %v207 = vunpack.c.l.b16 %v71
    %v208 = vunpack.c.l.b16 %v72
    %v209 = vunpack.c.l.b16 %v73
    %v210 = vunpack.c.l.b16 %v74
    %v211 = vunpack.c.l.b16 %v75
    %v212 = vunpack.c.l.b16 %v76
    %v213 = vunpack.c.l.b16 %v77
    %v214 = vunpack.c.l.b16 %v78
    %v215 = vunpack.c.l.b16 %v79
    %v216 = vunpack.c.l.b16 %v80
    %v217 = vunpack.c.l.b16 %v81
    %v218 = vunpack.c.l.b16 %v82
    %v219 = vunpack.c.l.b16 %v83
    %v220 = vunpack.c.l.b16 %v84
    %v221 = vunpack.c.l.b16 %v85
    %v222 = vunpack.c.l.b16 %v86
    %v223 = vunpack.c.l.b16 %v87
    %v224 = vunpack.c.l.b16 %v88
    %v225 = vpack.c.b16 %v162, %v161
    %v226 = vpack.c.b16 %v164, %v163
    %v227 = vpack.c.b16 %v166, %v165
    %v228 = vpack.c.b16 %v168, %v167
    %v229 = vpack.c.b16 %v170, %v169
    %v230 = vpack.c.b16 %v172, %v171
    %v231 = vpack.c.b16 %v174, %v173
    %v232 = vpack.c.b16 %v176, %v175
    %v233 = vpack.c.b16 %v178, %v177
    %v234 = vpack.c.b16 %v180, %v179
    %v235 = vpack.c.b16 %v182, %v181
    %v236 = vpack.c.b16 %v184, %v183
    %v237 = vpack.c.b16 %v186, %v185
    %v238 = vpack.c.b16 %v188, %v187
    %v239 = vpack.c.b16 %v190, %v189
    %v240 = vpack.c.b16 %v192, %v191
    %v241 = vpack.c.b16 %v194, %v193
    %v242 = vpack.c.b16 %v196, %v195
    %v243 = vpack.c.b16 %v198, %v197
    %v244 = vpack.c.b16 %v200, %v199
    %v245 = vpack.c.b16 %v202, %v201
    %v246 = vpack.c.b16 %v204, %v203
    %v247 = vpack.c.b16 %v206, %v205
    %v248 = vpack.c.b16 %v208, %v207
    %v249 = vpack.c.b16 %v210, %v209
    %v250 = vpack.c.b16 %v212, %v211
    %v251 = vpack.c.b16 %v214, %v213
    %v252 = vpack.c.b16 %v216, %v215
    %v253 = vpack.c.b16 %v218, %v217
    %v254 = vpack.c.b16 %v220, %v219
    %v255 = vpack.c.b16 %v222, %v221
    %v256 = vpack.c.b16 %v224, %v223
    %vm257 = vcmask 64512
    %v259 = vsel %vm257, %v225, 0
    %v262 = vsel %vm257, %v226, 0
    %v265 = vsel %vm257, %v227, 0
    %v268 = vsel %vm257, %v228, 0
    %v271 = vsel %vm257, %v229, 0
    %v274 = vsel %vm257, %v230, 0
    %v277 = vsel %vm257, %v231, 0
    %v280 = vsel %vm257, %v232, 0
    %v283 = vsel %vm257, %v233, 0
    %v286 = vsel %vm257, %v234, 0
    %v289 = vsel %vm257, %v235, 0
    %v292 = vsel %vm257, %v236, 0
    %v295 = vsel %vm257, %v237, 0
    %v298 = vsel %vm257, %v238, 0
    %v301 = vsel %vm257, %v239, 0
    %v304 = vsel %vm257, %v240, 0
    %v307 = vsel %vm257, %v241, 0
    %v310 = vsel %vm257, %v242, 0
    %v313 = vsel %vm257, %v243, 0
    %v316 = vsel %vm257, %v244, 0
    %v319 = vsel %vm257, %v245, 0
    %v322 = vsel %vm257, %v246, 0
    %v325 = vsel %vm257, %v247, 0
    %v328 = vsel %vm257, %v248, 0
    %v331 = vsel %vm257, %v249, 0
    %v334 = vsel %vm257, %v250, 0
    %v337 = vsel %vm257, %v251, 0
    %v340 = vsel %vm257, %v252, 0
    %v343 = vsel %vm257, %v253, 0
    %v346 = vsel %vm257, %v254, 0
    %v349 = vsel %vm257, %v255, 0
    %v352 = vsel %vm257, %v256, 0
    %vm354 = vcmask 1043456
    %v356 = vsel %vm354, %v89, 0
    %358 = vmatprep.subr.bf16.mxu0 0
    %359 = vmatpush1.bf16.msra.mxu0 0
    %360 = vmatprep.subr.bf16.mxu0 0
    %361 = vmatpush1.bf16.msra.mxu0 0
    %362 = vmatprep.subr.bf16.mxu0 0
    %363 = vmatpush1.bf16.msra.mxu0 0
    %364 = vmatprep.subr.bf16.mxu0 0
    %365 = vmatpush1.bf16.msra.mxu0 0
    %366 = vmatprep.subr.bf16.mxu0 0
    %367 = vmatpush1.bf16.msra.mxu0 0
    %368 = vmatprep.subr.bf16.mxu0 0
    %369 = vmatpush1.bf16.msra.mxu0 0
    %370 = vmatprep.subr.bf16.mxu0 0
    %371 = vmatpush1.bf16.msra.mxu0 0
    %372 = vmatprep.subr.bf16.mxu0 0
    %373 = vmatpush1.bf16.msra.mxu0 %v356
    %374 = vmatprep.subr.bf16.mxu0 0
    %375 = vmatpush2.bf16.msra.mxu0 0
    %376 = vmatprep.subr.bf16.mxu0 0
    %377 = vmatpush2.bf16.msra.mxu0 0
    %378 = vmatprep.subr.bf16.mxu0 0
    %379 = vmatpush2.bf16.msra.mxu0 0
    %380 = vmatprep.subr.bf16.mxu0 0
    %381 = vmatpush2.bf16.msra.mxu0 0
    %382 = vmatprep.subr.bf16.mxu0 0
    %383 = vmatpush2.bf16.msra.mxu0 0
    %384 = vmatprep.subr.bf16.mxu0 0
    %385 = vmatpush2.bf16.msra.mxu0 0
    %386 = vmatprep.subr.bf16.mxu0 0
    %387 = vmatpush2.bf16.msra.mxu0 0
    %388 = vmatprep.subr.bf16.mxu0 0
    %389 = vmatpush2.bf16.msra.mxu0 0
    %390 = vmatprep.mubr.bf16.mxu0 0
    %391 = vmatmul.mubr.bf16.gmra.mxu0 %v259
    %v392 = vpop.f32.mrf.mxu0
    %v393 = vadd.f32 %v95, %v392
    %v394 = vpop.f32.mrf.mxu0
    %v395 = vpop.f32.mrf.mxu0
    %v396 = vadd.f32 %v95, %v395
    %v397 = vpop.f32.mrf.mxu0
    %398 = vmatprep.mubr.bf16.mxu0 0
    %399 = vmatmul.mubr.bf16.gmra.mxu0 %v262
    %v400 = vpop.f32.mrf.mxu0
    %v401 = vadd.f32 %v95, %v400
    %v402 = vpop.f32.mrf.mxu0
    %v403 = vpop.f32.mrf.mxu0
    %v404 = vadd.f32 %v95, %v403
    %v405 = vpop.f32.mrf.mxu0
    %406 = vmatprep.mubr.bf16.mxu0 0
    %407 = vmatmul.mubr.bf16.gmra.mxu0 %v265
    %v408 = vpop.f32.mrf.mxu0
    %v409 = vadd.f32 %v95, %v408
    %v410 = vpop.f32.mrf.mxu0
    %v411 = vpop.f32.mrf.mxu0
    %v412 = vadd.f32 %v95, %v411
    %v413 = vpop.f32.mrf.mxu0
    %414 = vmatprep.mubr.bf16.mxu0 0
    %415 = vmatmul.mubr.bf16.gmra.mxu0 %v268
    %v416 = vpop.f32.mrf.mxu0
    %v417 = vadd.f32 %v95, %v416
    %v418 = vpop.f32.mrf.mxu0
    %v419 = vpop.f32.mrf.mxu0
    %v420 = vadd.f32 %v95, %v419
    %v421 = vpop.f32.mrf.mxu0
    %422 = vmatprep.mubr.bf16.mxu0 0
    %423 = vmatmul.mubr.bf16.gmra.mxu0 %v271
    %v424 = vpop.f32.mrf.mxu0
    %v425 = vadd.f32 %v95, %v424
    %v426 = vpop.f32.mrf.mxu0
    %v427 = vpop.f32.mrf.mxu0
    %v428 = vadd.f32 %v95, %v427
    %v429 = vpop.f32.mrf.mxu0
    %430 = vmatprep.mubr.bf16.mxu0 0
    %431 = vmatmul.mubr.bf16.gmra.mxu0 %v274
    %v432 = vpop.f32.mrf.mxu0
    %v433 = vadd.f32 %v95, %v432
    %v434 = vpop.f32.mrf.mxu0
    %v435 = vpop.f32.mrf.mxu0
    %v436 = vadd.f32 %v95, %v435
    %v437 = vpop.f32.mrf.mxu0
    %438 = vmatprep.mubr.bf16.mxu0 0
    %439 = vmatmul.mubr.bf16.gmra.mxu0 %v277
    %v440 = vpop.f32.mrf.mxu0
    %v441 = vadd.f32 %v95, %v440
    %v442 = vpop.f32.mrf.mxu0
    %v443 = vpop.f32.mrf.mxu0
    %v444 = vadd.f32 %v95, %v443
    %v445 = vpop.f32.mrf.mxu0
    %446 = vmatprep.mubr.bf16.mxu0 0
    %447 = vmatmul.mubr.bf16.gmra.mxu0 %v280
    %v448 = vpop.f32.mrf.mxu0
    %v449 = vadd.f32 %v95, %v448
    %v450 = vpop.f32.mrf.mxu0
    %v451 = vpop.f32.mrf.mxu0
    %v452 = vadd.f32 %v95, %v451
    %v453 = vpop.f32.mrf.mxu0
    %454 = vmatprep.mubr.bf16.mxu0 0
    %455 = vmatmul.mubr.bf16.gmra.mxu0 %v283
    %v456 = vpop.f32.mrf.mxu0
    %v457 = vadd.f32 %v95, %v456
    %v458 = vpop.f32.mrf.mxu0
    %v459 = vpop.f32.mrf.mxu0
    %v460 = vadd.f32 %v95, %v459
    %v461 = vpop.f32.mrf.mxu0
    %462 = vmatprep.mubr.bf16.mxu0 0
    %463 = vmatmul.mubr.bf16.gmra.mxu0 %v286
    %v464 = vpop.f32.mrf.mxu0
    %v465 = vadd.f32 %v95, %v464
    %v466 = vpop.f32.mrf.mxu0
    %v467 = vpop.f32.mrf.mxu0
    %v468 = vadd.f32 %v95, %v467
    %v469 = vpop.f32.mrf.mxu0
    %470 = vmatprep.mubr.bf16.mxu0 0
    %471 = vmatmul.mubr.bf16.gmra.mxu0 %v289
    %v472 = vpop.f32.mrf.mxu0
    %v473 = vadd.f32 %v95, %v472
    %v474 = vpop.f32.mrf.mxu0
    %v475 = vpop.f32.mrf.mxu0
    %v476 = vadd.f32 %v95, %v475
    %v477 = vpop.f32.mrf.mxu0
    %478 = vmatprep.mubr.bf16.mxu0 0
    %479 = vmatmul.mubr.bf16.gmra.mxu0 %v292
    %v480 = vpop.f32.mrf.mxu0
    %v481 = vadd.f32 %v95, %v480
    %v482 = vpop.f32.mrf.mxu0
    %v483 = vpop.f32.mrf.mxu0
    %v484 = vadd.f32 %v95, %v483
    %v485 = vpop.f32.mrf.mxu0
    %486 = vmatprep.mubr.bf16.mxu0 0
    %487 = vmatmul.mubr.bf16.gmra.mxu0 %v295
    %v488 = vpop.f32.mrf.mxu0
    %v489 = vadd.f32 %v95, %v488
    %v490 = vpop.f32.mrf.mxu0
    %v491 = vpop.f32.mrf.mxu0
    %v492 = vadd.f32 %v95, %v491
    %v493 = vpop.f32.mrf.mxu0
    %494 = vmatprep.mubr.bf16.mxu0 0
    %495 = vmatmul.mubr.bf16.gmra.mxu0 %v298
    %v496 = vpop.f32.mrf.mxu0
    %v497 = vadd.f32 %v95, %v496
    %v498 = vpop.f32.mrf.mxu0
    %v499 = vpop.f32.mrf.mxu0
    %v500 = vadd.f32 %v95, %v499
    %v501 = vpop.f32.mrf.mxu0
    %502 = vmatprep.mubr.bf16.mxu0 0
    %503 = vmatmul.mubr.bf16.gmra.mxu0 %v301
    %v504 = vpop.f32.mrf.mxu0
    %v505 = vadd.f32 %v95, %v504
    %v506 = vpop.f32.mrf.mxu0
    %v507 = vpop.f32.mrf.mxu0
    %v508 = vadd.f32 %v95, %v507
    %v509 = vpop.f32.mrf.mxu0
    %510 = vmatprep.mubr.bf16.mxu0 0
    %511 = vmatmul.mubr.bf16.gmra.mxu0 %v304
    %v512 = vpop.f32.mrf.mxu0
    %v513 = vadd.f32 %v95, %v512
    %v514 = vpop.f32.mrf.mxu0
    %v515 = vpop.f32.mrf.mxu0
    %v516 = vadd.f32 %v95, %v515
    %v517 = vpop.f32.mrf.mxu0
    %518 = vmatprep.mubr.bf16.mxu0 0
    %519 = vmatmul.mubr.bf16.gmra.mxu0 %v307
    %v520 = vpop.f32.mrf.mxu0
    %v521 = vadd.f32 %v95, %v520
    %v522 = vpop.f32.mrf.mxu0
    %v523 = vpop.f32.mrf.mxu0
    %v524 = vadd.f32 %v95, %v523
    %v525 = vpop.f32.mrf.mxu0
    %526 = vmatprep.mubr.bf16.mxu0 0
    %527 = vmatmul.mubr.bf16.gmra.mxu0 %v310
    %v528 = vpop.f32.mrf.mxu0
    %v529 = vadd.f32 %v95, %v528
    %v530 = vpop.f32.mrf.mxu0
    %v531 = vpop.f32.mrf.mxu0
    %v532 = vadd.f32 %v95, %v531
    %v533 = vpop.f32.mrf.mxu0
    %534 = vmatprep.mubr.bf16.mxu0 0
    %535 = vmatmul.mubr.bf16.gmra.mxu0 %v313
    %v536 = vpop.f32.mrf.mxu0
    %v537 = vadd.f32 %v95, %v536
    %v538 = vpop.f32.mrf.mxu0
    %v539 = vpop.f32.mrf.mxu0
    %v540 = vadd.f32 %v95, %v539
    %v541 = vpop.f32.mrf.mxu0
    %542 = vmatprep.mubr.bf16.mxu0 0
    %543 = vmatmul.mubr.bf16.gmra.mxu0 %v316
    %v544 = vpop.f32.mrf.mxu0
    %v545 = vadd.f32 %v95, %v544
    %v546 = vpop.f32.mrf.mxu0
    %v547 = vpop.f32.mrf.mxu0
    %v548 = vadd.f32 %v95, %v547
    %v549 = vpop.f32.mrf.mxu0
    %550 = vmatprep.mubr.bf16.mxu0 0
    %551 = vmatmul.mubr.bf16.gmra.mxu0 %v319
    %v552 = vpop.f32.mrf.mxu0
    %v553 = vadd.f32 %v95, %v552
    %v554 = vpop.f32.mrf.mxu0
    %v555 = vpop.f32.mrf.mxu0
    %v556 = vadd.f32 %v95, %v555
    %v557 = vpop.f32.mrf.mxu0
    %558 = vmatprep.mubr.bf16.mxu0 0
    %559 = vmatmul.mubr.bf16.gmra.mxu0 %v322
    %v560 = vpop.f32.mrf.mxu0
    %v561 = vadd.f32 %v95, %v560
    %v562 = vpop.f32.mrf.mxu0
    %v563 = vpop.f32.mrf.mxu0
    %v564 = vadd.f32 %v95, %v563
    %v565 = vpop.f32.mrf.mxu0
    %566 = vmatprep.mubr.bf16.mxu0 0
    %567 = vmatmul.mubr.bf16.gmra.mxu0 %v325
    %v568 = vpop.f32.mrf.mxu0
    %v569 = vadd.f32 %v95, %v568
    %v570 = vpop.f32.mrf.mxu0
    %v571 = vpop.f32.mrf.mxu0
    %v572 = vadd.f32 %v95, %v571
    %v573 = vpop.f32.mrf.mxu0
    %574 = vmatprep.mubr.bf16.mxu0 0
    %575 = vmatmul.mubr.bf16.gmra.mxu0 %v328
    %v576 = vpop.f32.mrf.mxu0
    %v577 = vadd.f32 %v95, %v576
    %v578 = vpop.f32.mrf.mxu0
    %v579 = vpop.f32.mrf.mxu0
    %v580 = vadd.f32 %v95, %v579
    %v581 = vpop.f32.mrf.mxu0
    %582 = vmatprep.mubr.bf16.mxu0 0
    %583 = vmatmul.mubr.bf16.gmra.mxu0 %v331
    %v584 = vpop.f32.mrf.mxu0
    %v585 = vadd.f32 %v95, %v584
    %v586 = vpop.f32.mrf.mxu0
    %v587 = vpop.f32.mrf.mxu0
    %v588 = vadd.f32 %v95, %v587
    %v589 = vpop.f32.mrf.mxu0
    %590 = vmatprep.mubr.bf16.mxu0 0
    %591 = vmatmul.mubr.bf16.gmra.mxu0 %v334
    %v592 = vpop.f32.mrf.mxu0
    %v593 = vadd.f32 %v95, %v592
    %v594 = vpop.f32.mrf.mxu0
    %v595 = vpop.f32.mrf.mxu0
    %v596 = vadd.f32 %v95, %v595
    %v597 = vpop.f32.mrf.mxu0
    %598 = vmatprep.mubr.bf16.mxu0 0
    %599 = vmatmul.mubr.bf16.gmra.mxu0 %v337
    %v600 = vpop.f32.mrf.mxu0
    %v601 = vadd.f32 %v95, %v600
    %v602 = vpop.f32.mrf.mxu0
    %v603 = vpop.f32.mrf.mxu0
    %v604 = vadd.f32 %v95, %v603
    %v605 = vpop.f32.mrf.mxu0
    %606 = vmatprep.mubr.bf16.mxu0 0
    %607 = vmatmul.mubr.bf16.gmra.mxu0 %v340
    %v608 = vpop.f32.mrf.mxu0
    %v609 = vadd.f32 %v95, %v608
    %v610 = vpop.f32.mrf.mxu0
    %v611 = vpop.f32.mrf.mxu0
    %v612 = vadd.f32 %v95, %v611
    %v613 = vpop.f32.mrf.mxu0
    %614 = vmatprep.mubr.bf16.mxu0 0
    %615 = vmatmul.mubr.bf16.gmra.mxu0 %v343
    %v616 = vpop.f32.mrf.mxu0
    %v617 = vadd.f32 %v95, %v616
    %v618 = vpop.f32.mrf.mxu0
    %v619 = vpop.f32.mrf.mxu0
    %v620 = vadd.f32 %v95, %v619
    %v621 = vpop.f32.mrf.mxu0
    %622 = vmatprep.mubr.bf16.mxu0 0
    %623 = vmatmul.mubr.bf16.gmra.mxu0 %v346
    %v624 = vpop.f32.mrf.mxu0
    %v625 = vadd.f32 %v95, %v624
    %v626 = vpop.f32.mrf.mxu0
    %v627 = vpop.f32.mrf.mxu0
    %v628 = vadd.f32 %v95, %v627
    %v629 = vpop.f32.mrf.mxu0
    %630 = vmatprep.mubr.bf16.mxu0 0
    %631 = vmatmul.mubr.bf16.gmra.mxu0 %v349
    %v632 = vpop.f32.mrf.mxu0
    %v633 = vadd.f32 %v95, %v632
    %v634 = vpop.f32.mrf.mxu0
    %v635 = vpop.f32.mrf.mxu0
    %v636 = vadd.f32 %v95, %v635
    %v637 = vpop.f32.mrf.mxu0
    %638 = vmatprep.mubr.bf16.mxu0 0
    %639 = vmatmul.mubr.bf16.gmra.mxu0 %v352
    %v640 = vpop.f32.mrf.mxu0
    %v641 = vadd.f32 %v95, %v640
    %v642 = vpop.f32.mrf.mxu0
    %v643 = vpop.f32.mrf.mxu0
    %v644 = vadd.f32 %v95, %v643
    %v645 = vpop.f32.mrf.mxu0
    %646 = vdwg.mxu0
    %v647 = vmax.f32 %v393, 0.0
    %v648 = vmax.f32 %v396, 0.0
    %v649 = vmax.f32 %v401, 0.0
    %v650 = vmax.f32 %v404, 0.0
    %v651 = vmax.f32 %v409, 0.0
    %v652 = vmax.f32 %v412, 0.0
    %v653 = vmax.f32 %v417, 0.0
    %v654 = vmax.f32 %v420, 0.0
    %v655 = vmax.f32 %v425, 0.0
    %v656 = vmax.f32 %v428, 0.0
    %v657 = vmax.f32 %v433, 0.0
    %v658 = vmax.f32 %v436, 0.0
    %v659 = vmax.f32 %v441, 0.0
    %v660 = vmax.f32 %v444, 0.0
    %v661 = vmax.f32 %v449, 0.0
    %v662 = vmax.f32 %v452, 0.0
    %v663 = vmax.f32 %v457, 0.0
    %v664 = vmax.f32 %v460, 0.0
    %v665 = vmax.f32 %v465, 0.0
    %v666 = vmax.f32 %v468, 0.0
    %v667 = vmax.f32 %v473, 0.0
    %v668 = vmax.f32 %v476, 0.0
    %v669 = vmax.f32 %v481, 0.0
    %v670 = vmax.f32 %v484, 0.0
    %v671 = vmax.f32 %v489, 0.0
    %v672 = vmax.f32 %v492, 0.0
    %v673 = vmax.f32 %v497, 0.0
    %v674 = vmax.f32 %v500, 0.0
    %v675 = vmax.f32 %v505, 0.0
    %v676 = vmax.f32 %v508, 0.0
    %v677 = vmax.f32 %v513, 0.0
    %v678 = vmax.f32 %v516, 0.0
    %v679 = vmax.f32 %v521, 0.0
    %v680 = vmax.f32 %v524, 0.0
    %v681 = vmax.f32 %v529, 0.0
    %v682 = vmax.f32 %v532, 0.0
    %v683 = vmax.f32 %v537, 0.0
    %v684 = vmax.f32 %v540, 0.0
    %v685 = vmax.f32 %v545, 0.0
    %v686 = vmax.f32 %v548, 0.0
    %v687 = vmax.f32 %v553, 0.0
    %v688 = vmax.f32 %v556, 0.0
    %v689 = vmax.f32 %v561, 0.0
    %v690 = vmax.f32 %v564, 0.0
    %v691 = vmax.f32 %v569, 0.0
    %v692 = vmax.f32 %v572, 0.0
    %v693 = vmax.f32 %v577, 0.0
    %v694 = vmax.f32 %v580, 0.0
    %v695 = vmax.f32 %v585, 0.0
    %v696 = vmax.f32 %v588, 0.0
    %v697 = vmax.f32 %v593, 0.0
    %v698 = vmax.f32 %v596, 0.0
    %v699 = vmax.f32 %v601, 0.0
    %v700 = vmax.f32 %v604, 0.0
    %v701 = vmax.f32 %v609, 0.0
    %v702 = vmax.f32 %v612, 0.0
    %v703 = vmax.f32 %v617, 0.0
    %v704 = vmax.f32 %v620, 0.0
    %v705 = vmax.f32 %v625, 0.0
    %v706 = vmax.f32 %v628, 0.0
    %v707 = vmax.f32 %v633, 0.0
    %v708 = vmax.f32 %v636, 0.0
    %v709 = vmax.f32 %v641, 0.0
    %v710 = vmax.f32 %v644, 0.0
    %v711 = vpack.c.bf16 %v648, %v647
    %v712 = vpack.c.bf16 %v650, %v649
    %v713 = vpack.c.bf16 %v652, %v651
    %v714 = vpack.c.bf16 %v654, %v653
    %v715 = vpack.c.bf16 %v656, %v655
    %v716 = vpack.c.bf16 %v658, %v657
    %v717 = vpack.c.bf16 %v660, %v659
    %v718 = vpack.c.bf16 %v662, %v661
    %v719 = vpack.c.bf16 %v664, %v663
    %v720 = vpack.c.bf16 %v666, %v665
    %v721 = vpack.c.bf16 %v668, %v667
    %v722 = vpack.c.bf16 %v670, %v669
    %v723 = vpack.c.bf16 %v672, %v671
    %v724 = vpack.c.bf16 %v674, %v673
    %v725 = vpack.c.bf16 %v676, %v675
    %v726 = vpack.c.bf16 %v678, %v677
    %v727 = vpack.c.bf16 %v680, %v679
    %v728 = vpack.c.bf16 %v682, %v681
    %v729 = vpack.c.bf16 %v684, %v683
    %v730 = vpack.c.bf16 %v686, %v685
    %v731 = vpack.c.bf16 %v688, %v687
    %v732 = vpack.c.bf16 %v690, %v689
    %v733 = vpack.c.bf16 %v692, %v691
    %v734 = vpack.c.bf16 %v694, %v693
    %v735 = vpack.c.bf16 %v696, %v695
    %v736 = vpack.c.bf16 %v698, %v697
    %v737 = vpack.c.bf16 %v700, %v699
    %v738 = vpack.c.bf16 %v702, %v701
    %v739 = vpack.c.bf16 %v704, %v703
    %v740 = vpack.c.bf16 %v706, %v705
    %v741 = vpack.c.bf16 %v708, %v707
    %v742 = vpack.c.bf16 %v710, %v709
    %v743 = vld [vmem:[%s4] sm:$0xf]
    %v744 = vld [vmem:[%s4 + $0x4] sm:$0xf]
    %v745 = vld [vmem:[%s4 + $0x8] sm:$0xf]
    %v746 = vld [vmem:[%s4 + $0xc] sm:$0xf]
    %v747 = vld [vmem:[%s4 + $0x10] sm:$0xf]
    %v748 = vld [vmem:[%s4 + $0x14] sm:$0xf]
    %v749 = vld [vmem:[%s4 + $0x18] sm:$0xf]
    %v750 = vld [vmem:[%s4 + $0x1c] sm:$0xf]
    %v751 = vld [vmem:[%s4 + $0x20] sm:$0xf]
    %v752 = vld [vmem:[%s4 + $0x24] sm:$0xf]
    %v753 = vld [vmem:[%s4 + $0x28] sm:$0xf]
    %v754 = vld [vmem:[%s4 + $0x2c] sm:$0xf]
    %v755 = vld [vmem:[%s4 + $0x30] sm:$0xf]
    %v756 = vld [vmem:[%s4 + $0x34] sm:$0xf]
    %v757 = vld [vmem:[%s4 + $0x38] sm:$0xf]
    %v758 = vld [vmem:[%s4 + $0x3c] sm:$0xf]
    %v759 = vld [vmem:[%s5] sm:$0x1]
    %v761 = vlaneseq
    %v762 = vshrl.u32 %v761, 7
    %v763 = vsub.s32 0, %v762
    %v764 = vrot.slane %v759, %v763
    %v782 = vunpack.c.l.b16 %v743
    %v783 = vunpack.c.l.b16 %v744
    %v784 = vunpack.c.l.b16 %v745
    %v785 = vunpack.c.l.b16 %v746
    %v786 = vunpack.c.l.b16 %v747
    %v787 = vunpack.c.l.b16 %v748
    %v788 = vunpack.c.l.b16 %v749
    %v789 = vunpack.c.l.b16 %v750
    %v790 = vunpack.c.l.b16 %v751
    %v791 = vunpack.c.l.b16 %v752
    %v792 = vunpack.c.l.b16 %v753
    %v793 = vunpack.c.l.b16 %v754
    %v794 = vunpack.c.l.b16 %v755
    %v795 = vunpack.c.l.b16 %v756
    %v796 = vunpack.c.l.b16 %v757
    %v797 = vunpack.c.l.b16 %v758
    %v798 = vpack.c.b16 %v783, %v782
    %v799 = vpack.c.b16 %v785, %v784
    %v800 = vpack.c.b16 %v787, %v786
    %v801 = vpack.c.b16 %v789, %v788
    %v802 = vpack.c.b16 %v791, %v790
    %v803 = vpack.c.b16 %v793, %v792
    %v804 = vpack.c.b16 %v795, %v794
    %v805 = vpack.c.b16 %v797, %v796
    %814 = vmatprep.subr.bf16.mxu0 0
    %815 = vmatpush1.bf16.msra.mxu0 %v805
    %816 = vmatprep.subr.bf16.mxu0 0
    %817 = vmatpush1.bf16.msra.mxu0 %v804
    %818 = vmatprep.subr.bf16.mxu0 0
    %819 = vmatpush1.bf16.msra.mxu0 %v803
    %820 = vmatprep.subr.bf16.mxu0 0
    %821 = vmatpush1.bf16.msra.mxu0 %v802
    %822 = vmatprep.subr.bf16.mxu0 0
    %823 = vmatpush1.bf16.msra.mxu0 %v801
    %824 = vmatprep.subr.bf16.mxu0 0
    %825 = vmatpush1.bf16.msra.mxu0 %v800
    %826 = vmatprep.subr.bf16.mxu0 0
    %827 = vmatpush1.bf16.msra.mxu0 %v799
    %828 = vmatprep.subr.bf16.mxu0 0
    %829 = vmatpush1.bf16.msra.mxu0 %v798
    %830 = vmatprep.subr.bf16.mxu0 0
    %831 = vmatpush2.bf16.msra.mxu0 0
    %832 = vmatprep.subr.bf16.mxu0 0
    %833 = vmatpush2.bf16.msra.mxu0 0
    %834 = vmatprep.subr.bf16.mxu0 0
    %835 = vmatpush2.bf16.msra.mxu0 0
    %836 = vmatprep.subr.bf16.mxu0 0
    %837 = vmatpush2.bf16.msra.mxu0 0
    %838 = vmatprep.subr.bf16.mxu0 0
    %839 = vmatpush2.bf16.msra.mxu0 0
    %840 = vmatprep.subr.bf16.mxu0 0
    %841 = vmatpush2.bf16.msra.mxu0 0
    %842 = vmatprep.subr.bf16.mxu0 0
    %843 = vmatpush2.bf16.msra.mxu0 0
    %844 = vmatprep.subr.bf16.mxu0 0
    %845 = vmatpush2.bf16.msra.mxu0 0
    %846 = vmatprep.mubr.bf16.mxu0 0
    %847 = vmatmul.mubr.bf16.gmra.mxu0 %v711
    %v848 = vpop.f32.mrf.mxu0
    %v849 = vadd.f32 %v764, %v848
    %v850 = vpop.f32.mrf.mxu0
    %v851 = vpop.f32.mrf.mxu0
    %v852 = vadd.f32 %v764, %v851
    %v853 = vpop.f32.mrf.mxu0
    %854 = vmatprep.mubr.bf16.mxu0 0
    %855 = vmatmul.mubr.bf16.gmra.mxu0 %v712
    %v856 = vpop.f32.mrf.mxu0
    %v857 = vadd.f32 %v764, %v856
    %v858 = vpop.f32.mrf.mxu0
    %v859 = vpop.f32.mrf.mxu0
    %v860 = vadd.f32 %v764, %v859
    %v861 = vpop.f32.mrf.mxu0
    %862 = vmatprep.mubr.bf16.mxu0 0
    %863 = vmatmul.mubr.bf16.gmra.mxu0 %v713
    %v864 = vpop.f32.mrf.mxu0
    %v865 = vadd.f32 %v764, %v864
    %v866 = vpop.f32.mrf.mxu0
    %v867 = vpop.f32.mrf.mxu0
    %v868 = vadd.f32 %v764, %v867
    %v869 = vpop.f32.mrf.mxu0
    %870 = vmatprep.mubr.bf16.mxu0 0
    %871 = vmatmul.mubr.bf16.gmra.mxu0 %v714
    %v872 = vpop.f32.mrf.mxu0
    %v873 = vadd.f32 %v764, %v872
    %v874 = vpop.f32.mrf.mxu0
    %v875 = vpop.f32.mrf.mxu0
    %v876 = vadd.f32 %v764, %v875
    %v877 = vpop.f32.mrf.mxu0
    %878 = vmatprep.mubr.bf16.mxu0 0
    %879 = vmatmul.mubr.bf16.gmra.mxu0 %v715
    %v880 = vpop.f32.mrf.mxu0
    %v881 = vadd.f32 %v764, %v880
    %v882 = vpop.f32.mrf.mxu0
    %v883 = vpop.f32.mrf.mxu0
    %v884 = vadd.f32 %v764, %v883
    %v885 = vpop.f32.mrf.mxu0
    %886 = vmatprep.mubr.bf16.mxu0 0
    %887 = vmatmul.mubr.bf16.gmra.mxu0 %v716
    %v888 = vpop.f32.mrf.mxu0
    %v889 = vadd.f32 %v764, %v888
    %v890 = vpop.f32.mrf.mxu0
    %v891 = vpop.f32.mrf.mxu0
    %v892 = vadd.f32 %v764, %v891
    %v893 = vpop.f32.mrf.mxu0
    %894 = vmatprep.mubr.bf16.mxu0 0
    %895 = vmatmul.mubr.bf16.gmra.mxu0 %v717
    %v896 = vpop.f32.mrf.mxu0
    %v897 = vadd.f32 %v764, %v896
    %v898 = vpop.f32.mrf.mxu0
    %v899 = vpop.f32.mrf.mxu0
    %v900 = vadd.f32 %v764, %v899
    %v901 = vpop.f32.mrf.mxu0
    %902 = vmatprep.mubr.bf16.mxu0 0
    %903 = vmatmul.mubr.bf16.gmra.mxu0 %v718
    %v904 = vpop.f32.mrf.mxu0
    %v905 = vadd.f32 %v764, %v904
    %v906 = vpop.f32.mrf.mxu0
    %v907 = vpop.f32.mrf.mxu0
    %v908 = vadd.f32 %v764, %v907
    %v909 = vpop.f32.mrf.mxu0
    %910 = vmatprep.mubr.bf16.mxu0 0
    %911 = vmatmul.mubr.bf16.gmra.mxu0 %v719
    %v912 = vpop.f32.mrf.mxu0
    %v913 = vadd.f32 %v764, %v912
    %v914 = vpop.f32.mrf.mxu0
    %v915 = vpop.f32.mrf.mxu0
    %v916 = vadd.f32 %v764, %v915
    %v917 = vpop.f32.mrf.mxu0
    %918 = vmatprep.mubr.bf16.mxu0 0
    %919 = vmatmul.mubr.bf16.gmra.mxu0 %v720
    %v920 = vpop.f32.mrf.mxu0
    %v921 = vadd.f32 %v764, %v920
    %v922 = vpop.f32.mrf.mxu0
    %v923 = vpop.f32.mrf.mxu0
    %v924 = vadd.f32 %v764, %v923
    %v925 = vpop.f32.mrf.mxu0
    %926 = vmatprep.mubr.bf16.mxu0 0
    %927 = vmatmul.mubr.bf16.gmra.mxu0 %v721
    %v928 = vpop.f32.mrf.mxu0
    %v929 = vadd.f32 %v764, %v928
    %v930 = vpop.f32.mrf.mxu0
    %v931 = vpop.f32.mrf.mxu0
    %v932 = vadd.f32 %v764, %v931
    %v933 = vpop.f32.mrf.mxu0
    %934 = vmatprep.mubr.bf16.mxu0 0
    %935 = vmatmul.mubr.bf16.gmra.mxu0 %v722
    %v936 = vpop.f32.mrf.mxu0
    %v937 = vadd.f32 %v764, %v936
    %v938 = vpop.f32.mrf.mxu0
    %v939 = vpop.f32.mrf.mxu0
    %v940 = vadd.f32 %v764, %v939
    %v941 = vpop.f32.mrf.mxu0
    %942 = vmatprep.mubr.bf16.mxu0 0
    %943 = vmatmul.mubr.bf16.gmra.mxu0 %v723
    %v944 = vpop.f32.mrf.mxu0
    %v945 = vadd.f32 %v764, %v944
    %v946 = vpop.f32.mrf.mxu0
    %v947 = vpop.f32.mrf.mxu0
    %v948 = vadd.f32 %v764, %v947
    %v949 = vpop.f32.mrf.mxu0
    %950 = vmatprep.mubr.bf16.mxu0 0
    %951 = vmatmul.mubr.bf16.gmra.mxu0 %v724
    %v952 = vpop.f32.mrf.mxu0
    %v953 = vadd.f32 %v764, %v952
    %v954 = vpop.f32.mrf.mxu0
    %v955 = vpop.f32.mrf.mxu0
    %v956 = vadd.f32 %v764, %v955
    %v957 = vpop.f32.mrf.mxu0
    %958 = vmatprep.mubr.bf16.mxu0 0
    %959 = vmatmul.mubr.bf16.gmra.mxu0 %v725
    %v960 = vpop.f32.mrf.mxu0
    %v961 = vadd.f32 %v764, %v960
    %v962 = vpop.f32.mrf.mxu0
    %v963 = vpop.f32.mrf.mxu0
    %v964 = vadd.f32 %v764, %v963
    %v965 = vpop.f32.mrf.mxu0
    %966 = vmatprep.mubr.bf16.mxu0 0
    %967 = vmatmul.mubr.bf16.gmra.mxu0 %v726
    %v968 = vpop.f32.mrf.mxu0
    %v969 = vadd.f32 %v764, %v968
    %v970 = vpop.f32.mrf.mxu0
    %v971 = vpop.f32.mrf.mxu0
    %v972 = vadd.f32 %v764, %v971
    %v973 = vpop.f32.mrf.mxu0
    %974 = vmatprep.mubr.bf16.mxu0 0
    %975 = vmatmul.mubr.bf16.gmra.mxu0 %v727
    %v976 = vpop.f32.mrf.mxu0
    %v977 = vadd.f32 %v764, %v976
    %v978 = vpop.f32.mrf.mxu0
    %v979 = vpop.f32.mrf.mxu0
    %v980 = vadd.f32 %v764, %v979
    %v981 = vpop.f32.mrf.mxu0
    %982 = vmatprep.mubr.bf16.mxu0 0
    %983 = vmatmul.mubr.bf16.gmra.mxu0 %v728
    %v984 = vpop.f32.mrf.mxu0
    %v985 = vadd.f32 %v764, %v984
    %v986 = vpop.f32.mrf.mxu0
    %v987 = vpop.f32.mrf.mxu0
    %v988 = vadd.f32 %v764, %v987
    %v989 = vpop.f32.mrf.mxu0
    %990 = vmatprep.mubr.bf16.mxu0 0
    %991 = vmatmul.mubr.bf16.gmra.mxu0 %v729
    %v992 = vpop.f32.mrf.mxu0
    %v993 = vadd.f32 %v764, %v992
    %v994 = vpop.f32.mrf.mxu0
    %v995 = vpop.f32.mrf.mxu0
    %v996 = vadd.f32 %v764, %v995
    %v997 = vpop.f32.mrf.mxu0
    %998 = vmatprep.mubr.bf16.mxu0 0
    %999 = vmatmul.mubr.bf16.gmra.mxu0 %v730
    %v1000 = vpop.f32.mrf.mxu0
    %v1001 = vadd.f32 %v764, %v1000
    %v1002 = vpop.f32.mrf.mxu0
    %v1003 = vpop.f32.mrf.mxu0
    %v1004 = vadd.f32 %v764, %v1003
    %v1005 = vpop.f32.mrf.mxu0
    %1006 = vmatprep.mubr.bf16.mxu0 0
    %1007 = vmatmul.mubr.bf16.gmra.mxu0 %v731
    %v1008 = vpop.f32.mrf.mxu0
    %v1009 = vadd.f32 %v764, %v1008
    %v1010 = vpop.f32.mrf.mxu0
    %v1011 = vpop.f32.mrf.mxu0
    %v1012 = vadd.f32 %v764, %v1011
    %v1013 = vpop.f32.mrf.mxu0
    %1014 = vmatprep.mubr.bf16.mxu0 0
    %1015 = vmatmul.mubr.bf16.gmra.mxu0 %v732
    %v1016 = vpop.f32.mrf.mxu0
    %v1017 = vadd.f32 %v764, %v1016
    %v1018 = vpop.f32.mrf.mxu0
    %v1019 = vpop.f32.mrf.mxu0
    %v1020 = vadd.f32 %v764, %v1019
    %v1021 = vpop.f32.mrf.mxu0
    %1022 = vmatprep.mubr.bf16.mxu0 0
    %1023 = vmatmul.mubr.bf16.gmra.mxu0 %v733
    %v1024 = vpop.f32.mrf.mxu0
    %v1025 = vadd.f32 %v764, %v1024
    %v1026 = vpop.f32.mrf.mxu0
    %v1027 = vpop.f32.mrf.mxu0
    %v1028 = vadd.f32 %v764, %v1027
    %v1029 = vpop.f32.mrf.mxu0
    %1030 = vmatprep.mubr.bf16.mxu0 0
    %1031 = vmatmul.mubr.bf16.gmra.mxu0 %v734
    %v1032 = vpop.f32.mrf.mxu0
    %v1033 = vadd.f32 %v764, %v1032
    %v1034 = vpop.f32.mrf.mxu0
    %v1035 = vpop.f32.mrf.mxu0
    %v1036 = vadd.f32 %v764, %v1035
    %v1037 = vpop.f32.mrf.mxu0
    %1038 = vmatprep.mubr.bf16.mxu0 0
    %1039 = vmatmul.mubr.bf16.gmra.mxu0 %v735
    %v1040 = vpop.f32.mrf.mxu0
    %v1041 = vadd.f32 %v764, %v1040
    %v1042 = vpop.f32.mrf.mxu0
    %v1043 = vpop.f32.mrf.mxu0
    %v1044 = vadd.f32 %v764, %v1043
    %v1045 = vpop.f32.mrf.mxu0
    %1046 = vmatprep.mubr.bf16.mxu0 0
    %1047 = vmatmul.mubr.bf16.gmra.mxu0 %v736
    %v1048 = vpop.f32.mrf.mxu0
    %v1049 = vadd.f32 %v764, %v1048
    %v1050 = vpop.f32.mrf.mxu0
    %v1051 = vpop.f32.mrf.mxu0
    %v1052 = vadd.f32 %v764, %v1051
    %v1053 = vpop.f32.mrf.mxu0
    %1054 = vmatprep.mubr.bf16.mxu0 0
    %1055 = vmatmul.mubr.bf16.gmra.mxu0 %v737
    %v1056 = vpop.f32.mrf.mxu0
    %v1057 = vadd.f32 %v764, %v1056
    %v1058 = vpop.f32.mrf.mxu0
    %v1059 = vpop.f32.mrf.mxu0
    %v1060 = vadd.f32 %v764, %v1059
    %v1061 = vpop.f32.mrf.mxu0
    %1062 = vmatprep.mubr.bf16.mxu0 0
    %1063 = vmatmul.mubr.bf16.gmra.mxu0 %v738
    %v1064 = vpop.f32.mrf.mxu0
    %v1065 = vadd.f32 %v764, %v1064
    %v1066 = vpop.f32.mrf.mxu0
    %v1067 = vpop.f32.mrf.mxu0
    %v1068 = vadd.f32 %v764, %v1067
    %v1069 = vpop.f32.mrf.mxu0
    %1070 = vmatprep.mubr.bf16.mxu0 0
    %1071 = vmatmul.mubr.bf16.gmra.mxu0 %v739
    %v1072 = vpop.f32.mrf.mxu0
    %v1073 = vadd.f32 %v764, %v1072
    %v1074 = vpop.f32.mrf.mxu0
    %v1075 = vpop.f32.mrf.mxu0
    %v1076 = vadd.f32 %v764, %v1075
    %v1077 = vpop.f32.mrf.mxu0
    %1078 = vmatprep.mubr.bf16.mxu0 0
    %1079 = vmatmul.mubr.bf16.gmra.mxu0 %v740
    %v1080 = vpop.f32.mrf.mxu0
    %v1081 = vadd.f32 %v764, %v1080
    %v1082 = vpop.f32.mrf.mxu0
    %v1083 = vpop.f32.mrf.mxu0
    %v1084 = vadd.f32 %v764, %v1083
    %v1085 = vpop.f32.mrf.mxu0
    %1086 = vmatprep.mubr.bf16.mxu0 0
    %1087 = vmatmul.mubr.bf16.gmra.mxu0 %v741
    %v1088 = vpop.f32.mrf.mxu0
    %v1089 = vadd.f32 %v764, %v1088
    %v1090 = vpop.f32.mrf.mxu0
    %v1091 = vpop.f32.mrf.mxu0
    %v1092 = vadd.f32 %v764, %v1091
    %v1093 = vpop.f32.mrf.mxu0
    %1094 = vmatprep.mubr.bf16.mxu0 0
    %1095 = vmatmul.mubr.bf16.gmra.mxu0 %v742
    %v1096 = vpop.f32.mrf.mxu0
    %v1097 = vadd.f32 %v764, %v1096
    %v1098 = vpop.f32.mrf.mxu0
    %v1099 = vpop.f32.mrf.mxu0
    %v1100 = vadd.f32 %v764, %v1099
    %v1101 = vpop.f32.mrf.mxu0
    %1102 = vdwg.mxu0
    %v1103 = vmax.f32 %v849, 0.0
    %v1104 = vmax.f32 %v852, 0.0
    %v1105 = vmax.f32 %v857, 0.0
    %v1106 = vmax.f32 %v860, 0.0
    %v1107 = vmax.f32 %v865, 0.0
    %v1108 = vmax.f32 %v868, 0.0
    %v1109 = vmax.f32 %v873, 0.0
    %v1110 = vmax.f32 %v876, 0.0
    %v1111 = vmax.f32 %v881, 0.0
    %v1112 = vmax.f32 %v884, 0.0
    %v1113 = vmax.f32 %v889, 0.0
    %v1114 = vmax.f32 %v892, 0.0
    %v1115 = vmax.f32 %v897, 0.0
    %v1116 = vmax.f32 %v900, 0.0
    %v1117 = vmax.f32 %v905, 0.0
    %v1118 = vmax.f32 %v908, 0.0
    %v1119 = vmax.f32 %v913, 0.0
    %v1120 = vmax.f32 %v916, 0.0
    %v1121 = vmax.f32 %v921, 0.0
    %v1122 = vmax.f32 %v924, 0.0
    %v1123 = vmax.f32 %v929, 0.0
    %v1124 = vmax.f32 %v932, 0.0
    %v1125 = vmax.f32 %v937, 0.0
    %v1126 = vmax.f32 %v940, 0.0
    %v1127 = vmax.f32 %v945, 0.0
    %v1128 = vmax.f32 %v948, 0.0
    %v1129 = vmax.f32 %v953, 0.0
    %v1130 = vmax.f32 %v956, 0.0
    %v1131 = vmax.f32 %v961, 0.0
    %v1132 = vmax.f32 %v964, 0.0
    %v1133 = vmax.f32 %v969, 0.0
    %v1134 = vmax.f32 %v972, 0.0
    %v1135 = vmax.f32 %v977, 0.0
    %v1136 = vmax.f32 %v980, 0.0
    %v1137 = vmax.f32 %v985, 0.0
    %v1138 = vmax.f32 %v988, 0.0
    %v1139 = vmax.f32 %v993, 0.0
    %v1140 = vmax.f32 %v996, 0.0
    %v1141 = vmax.f32 %v1001, 0.0
    %v1142 = vmax.f32 %v1004, 0.0
    %v1143 = vmax.f32 %v1009, 0.0
    %v1144 = vmax.f32 %v1012, 0.0
    %v1145 = vmax.f32 %v1017, 0.0
    %v1146 = vmax.f32 %v1020, 0.0
    %v1147 = vmax.f32 %v1025, 0.0
    %v1148 = vmax.f32 %v1028, 0.0
    %v1149 = vmax.f32 %v1033, 0.0
    %v1150 = vmax.f32 %v1036, 0.0
    %v1151 = vmax.f32 %v1041, 0.0
    %v1152 = vmax.f32 %v1044, 0.0
    %v1153 = vmax.f32 %v1049, 0.0
    %v1154 = vmax.f32 %v1052, 0.0
    %v1155 = vmax.f32 %v1057, 0.0
    %v1156 = vmax.f32 %v1060, 0.0
    %v1157 = vmax.f32 %v1065, 0.0
    %v1158 = vmax.f32 %v1068, 0.0
    %v1159 = vmax.f32 %v1073, 0.0
    %v1160 = vmax.f32 %v1076, 0.0
    %v1161 = vmax.f32 %v1081, 0.0
    %v1162 = vmax.f32 %v1084, 0.0
    %v1163 = vmax.f32 %v1089, 0.0
    %v1164 = vmax.f32 %v1092, 0.0
    %v1165 = vmax.f32 %v1097, 0.0
    %v1166 = vmax.f32 %v1100, 0.0
    %v1167 = vld [vmem:[%s1] sm:$0xff]
    %v1168 = vld [vmem:[%s1 + $0x8] sm:$0xff]
    %v1169 = vld [vmem:[%s1 + $0x10] sm:$0xff]
    %v1170 = vld [vmem:[%s1 + $0x18] sm:$0xff]
    %v1171 = vld [vmem:[%s1 + $0x20] sm:$0xff]
    %v1172 = vld [vmem:[%s1 + $0x28] sm:$0xff]
    %v1173 = vld [vmem:[%s1 + $0x30] sm:$0xff]
    %v1174 = vld [vmem:[%s1 + $0x38] sm:$0xff]
    %v1175 = vld [vmem:[%s1 + $0x40] sm:$0xff]
    %v1176 = vld [vmem:[%s1 + $0x48] sm:$0xff]
    %v1177 = vld [vmem:[%s1 + $0x50] sm:$0xff]
    %v1178 = vld [vmem:[%s1 + $0x58] sm:$0xff]
    %v1179 = vld [vmem:[%s1 + $0x60] sm:$0xff]
    %v1180 = vld [vmem:[%s1 + $0x68] sm:$0xff]
    %v1181 = vld [vmem:[%s1 + $0x70] sm:$0xff]
    %v1182 = vld [vmem:[%s1 + $0x78] sm:$0xff]
    %v1183 = vld [vmem:[%s1 + $0x80] sm:$0xff]
    %v1184 = vld [vmem:[%s1 + $0x88] sm:$0xff]
    %v1185 = vld [vmem:[%s1 + $0x90] sm:$0xff]
    %v1186 = vld [vmem:[%s1 + $0x98] sm:$0xff]
    %v1187 = vld [vmem:[%s1 + $0xa0] sm:$0xff]
    %v1188 = vld [vmem:[%s1 + $0xa8] sm:$0xff]
    %v1189 = vld [vmem:[%s1 + $0xb0] sm:$0xff]
    %v1190 = vld [vmem:[%s1 + $0xb8] sm:$0xff]
    %v1191 = vld [vmem:[%s1 + $0xc0] sm:$0xff]
    %v1192 = vld [vmem:[%s1 + $0xc8] sm:$0xff]
    %v1193 = vld [vmem:[%s1 + $0xd0] sm:$0xff]
    %v1194 = vld [vmem:[%s1 + $0xd8] sm:$0xff]
    %v1195 = vld [vmem:[%s1 + $0xe0] sm:$0xff]
    %v1196 = vld [vmem:[%s1 + $0xe8] sm:$0xff]
    %v1197 = vld [vmem:[%s1 + $0xf0] sm:$0xff]
    %v1198 = vld [vmem:[%s1 + $0xf8] sm:$0xff]
    %v1199 = vld [vmem:[%s1 + $0x100] sm:$0xff]
    %v1200 = vld [vmem:[%s1 + $0x108] sm:$0xff]
    %v1201 = vld [vmem:[%s1 + $0x110] sm:$0xff]
    %v1202 = vld [vmem:[%s1 + $0x118] sm:$0xff]
    %v1203 = vld [vmem:[%s1 + $0x120] sm:$0xff]
    %v1204 = vld [vmem:[%s1 + $0x128] sm:$0xff]
    %v1205 = vld [vmem:[%s1 + $0x130] sm:$0xff]
    %v1206 = vld [vmem:[%s1 + $0x138] sm:$0xff]
    %v1207 = vld [vmem:[%s1 + $0x140] sm:$0xff]
    %v1208 = vld [vmem:[%s1 + $0x148] sm:$0xff]
    %v1209 = vld [vmem:[%s1 + $0x150] sm:$0xff]
    %v1210 = vld [vmem:[%s1 + $0x158] sm:$0xff]
    %v1211 = vld [vmem:[%s1 + $0x160] sm:$0xff]
    %v1212 = vld [vmem:[%s1 + $0x168] sm:$0xff]
    %v1213 = vld [vmem:[%s1 + $0x170] sm:$0xff]
    %v1214 = vld [vmem:[%s1 + $0x178] sm:$0xff]
    %v1215 = vld [vmem:[%s1 + $0x180] sm:$0xff]
    %v1216 = vld [vmem:[%s1 + $0x188] sm:$0xff]
    %v1217 = vld [vmem:[%s1 + $0x190] sm:$0xff]
    %v1218 = vld [vmem:[%s1 + $0x198] sm:$0xff]
    %v1219 = vld [vmem:[%s1 + $0x1a0] sm:$0xff]
    %v1220 = vld [vmem:[%s1 + $0x1a8] sm:$0xff]
    %v1221 = vld [vmem:[%s1 + $0x1b0] sm:$0xff]
    %v1222 = vld [vmem:[%s1 + $0x1b8] sm:$0xff]
    %v1223 = vld [vmem:[%s1 + $0x1c0] sm:$0xff]
    %v1224 = vld [vmem:[%s1 + $0x1c8] sm:$0xff]
    %v1225 = vld [vmem:[%s1 + $0x1d0] sm:$0xff]
    %v1226 = vld [vmem:[%s1 + $0x1d8] sm:$0xff]
    %v1227 = vld [vmem:[%s1 + $0x1e0] sm:$0xff]
    %v1228 = vld [vmem:[%s1 + $0x1e8] sm:$0xff]
    %v1229 = vld [vmem:[%s1 + $0x1f0] sm:$0xff]
    %v1230 = vld [vmem:[%s1 + $0x1f8] sm:$0xff]
    %1232 = vset.pattern.permute.xlu0 0
    %1233 = vperm.xlu0 %1232, %v1167
    %v1234 = vpop.permute.xlu0 %1233
    %1237 = vset.pattern.permute.xlu0 0
    %1238 = vperm.xlu0 %1237, %v1168
    %v1239 = vpop.permute.xlu0 %1238
    %1242 = vset.pattern.permute.xlu0 0
    %1243 = vperm.xlu0 %1242, %v1169
    %v1244 = vpop.permute.xlu0 %1243
    %1247 = vset.pattern.permute.xlu0 0
    %1248 = vperm.xlu0 %1247, %v1170
    %v1249 = vpop.permute.xlu0 %1248
    %1252 = vset.pattern.permute.xlu0 0
    %1253 = vperm.xlu0 %1252, %v1171
    %v1254 = vpop.permute.xlu0 %1253
    %1257 = vset.pattern.permute.xlu0 0
    %1258 = vperm.xlu0 %1257, %v1172
    %v1259 = vpop.permute.xlu0 %1258
    %1262 = vset.pattern.permute.xlu0 0
    %1263 = vperm.xlu0 %1262, %v1173
    %v1264 = vpop.permute.xlu0 %1263
    %1267 = vset.pattern.permute.xlu0 0
    %1268 = vperm.xlu0 %1267, %v1174
    %v1269 = vpop.permute.xlu0 %1268
    %1272 = vset.pattern.permute.xlu0 0
    %1273 = vperm.xlu0 %1272, %v1175
    %v1274 = vpop.permute.xlu0 %1273
    %1277 = vset.pattern.permute.xlu0 0
    %1278 = vperm.xlu0 %1277, %v1176
    %v1279 = vpop.permute.xlu0 %1278
    %1282 = vset.pattern.permute.xlu0 0
    %1283 = vperm.xlu0 %1282, %v1177
    %v1284 = vpop.permute.xlu0 %1283
    %1287 = vset.pattern.permute.xlu0 0
    %1288 = vperm.xlu0 %1287, %v1178
    %v1289 = vpop.permute.xlu0 %1288
    %1292 = vset.pattern.permute.xlu0 0
    %1293 = vperm.xlu0 %1292, %v1179
    %v1294 = vpop.permute.xlu0 %1293
    %1297 = vset.pattern.permute.xlu0 0
    %1298 = vperm.xlu0 %1297, %v1180
    %v1299 = vpop.permute.xlu0 %1298
    %1302 = vset.pattern.permute.xlu0 0
    %1303 = vperm.xlu0 %1302, %v1181
    %v1304 = vpop.permute.xlu0 %1303
    %1307 = vset.pattern.permute.xlu0 0
    %1308 = vperm.xlu0 %1307, %v1182
    %v1309 = vpop.permute.xlu0 %1308
    %1312 = vset.pattern.permute.xlu0 0
    %1313 = vperm.xlu0 %1312, %v1183
    %v1314 = vpop.permute.xlu0 %1313
    %1317 = vset.pattern.permute.xlu0 0
    %1318 = vperm.xlu0 %1317, %v1184
    %v1319 = vpop.permute.xlu0 %1318
    %1322 = vset.pattern.permute.xlu0 0
    %1323 = vperm.xlu0 %1322, %v1185
    %v1324 = vpop.permute.xlu0 %1323
    %1327 = vset.pattern.permute.xlu0 0
    %1328 = vperm.xlu0 %1327, %v1186
    %v1329 = vpop.permute.xlu0 %1328
    %1332 = vset.pattern.permute.xlu0 0
    %1333 = vperm.xlu0 %1332, %v1187
    %v1334 = vpop.permute.xlu0 %1333
    %1337 = vset.pattern.permute.xlu0 0
    %1338 = vperm.xlu0 %1337, %v1188
    %v1339 = vpop.permute.xlu0 %1338
    %1342 = vset.pattern.permute.xlu0 0
    %1343 = vperm.xlu0 %1342, %v1189
    %v1344 = vpop.permute.xlu0 %1343
    %1347 = vset.pattern.permute.xlu0 0
    %1348 = vperm.xlu0 %1347, %v1190
    %v1349 = vpop.permute.xlu0 %1348
    %1352 = vset.pattern.permute.xlu0 0
    %1353 = vperm.xlu0 %1352, %v1191
    %v1354 = vpop.permute.xlu0 %1353
    %1357 = vset.pattern.permute.xlu0 0
    %1358 = vperm.xlu0 %1357, %v1192
    %v1359 = vpop.permute.xlu0 %1358
    %1362 = vset.pattern.permute.xlu0 0
    %1363 = vperm.xlu0 %1362, %v1193
    %v1364 = vpop.permute.xlu0 %1363
    %1367 = vset.pattern.permute.xlu0 0
    %1368 = vperm.xlu0 %1367, %v1194
    %v1369 = vpop.permute.xlu0 %1368
    %1372 = vset.pattern.permute.xlu0 0
    %1373 = vperm.xlu0 %1372, %v1195
    %v1374 = vpop.permute.xlu0 %1373
    %1377 = vset.pattern.permute.xlu0 0
    %1378 = vperm.xlu0 %1377, %v1196
    %v1379 = vpop.permute.xlu0 %1378
    %1382 = vset.pattern.permute.xlu0 0
    %1383 = vperm.xlu0 %1382, %v1197
    %v1384 = vpop.permute.xlu0 %1383
    %1387 = vset.pattern.permute.xlu0 0
    %1388 = vperm.xlu0 %1387, %v1198
    %v1389 = vpop.permute.xlu0 %1388
    %1392 = vset.pattern.permute.xlu0 0
    %1393 = vperm.xlu0 %1392, %v1199
    %v1394 = vpop.permute.xlu0 %1393
    %1397 = vset.pattern.permute.xlu0 0
    %1398 = vperm.xlu0 %1397, %v1200
    %v1399 = vpop.permute.xlu0 %1398
    %1402 = vset.pattern.permute.xlu0 0
    %1403 = vperm.xlu0 %1402, %v1201
    %v1404 = vpop.permute.xlu0 %1403
    %1407 = vset.pattern.permute.xlu0 0
    %1408 = vperm.xlu0 %1407, %v1202
    %v1409 = vpop.permute.xlu0 %1408
    %1412 = vset.pattern.permute.xlu0 0
    %1413 = vperm.xlu0 %1412, %v1203
    %v1414 = vpop.permute.xlu0 %1413
    %1417 = vset.pattern.permute.xlu0 0
    %1418 = vperm.xlu0 %1417, %v1204
    %v1419 = vpop.permute.xlu0 %1418
    %1422 = vset.pattern.permute.xlu0 0
    %1423 = vperm.xlu0 %1422, %v1205
    %v1424 = vpop.permute.xlu0 %1423
    %1427 = vset.pattern.permute.xlu0 0
    %1428 = vperm.xlu0 %1427, %v1206
    %v1429 = vpop.permute.xlu0 %1428
    %1432 = vset.pattern.permute.xlu0 0
    %1433 = vperm.xlu0 %1432, %v1207
    %v1434 = vpop.permute.xlu0 %1433
    %1437 = vset.pattern.permute.xlu0 0
    %1438 = vperm.xlu0 %1437, %v1208
    %v1439 = vpop.permute.xlu0 %1438
    %1442 = vset.pattern.permute.xlu0 0
    %1443 = vperm.xlu0 %1442, %v1209
    %v1444 = vpop.permute.xlu0 %1443
    %1447 = vset.pattern.permute.xlu0 0
    %1448 = vperm.xlu0 %1447, %v1210
    %v1449 = vpop.permute.xlu0 %1448
    %1452 = vset.pattern.permute.xlu0 0
    %1453 = vperm.xlu0 %1452, %v1211
    %v1454 = vpop.permute.xlu0 %1453
    %1457 = vset.pattern.permute.xlu0 0
    %1458 = vperm.xlu0 %1457, %v1212
    %v1459 = vpop.permute.xlu0 %1458
    %1462 = vset.pattern.permute.xlu0 0
    %1463 = vperm.xlu0 %1462, %v1213
    %v1464 = vpop.permute.xlu0 %1463
    %1467 = vset.pattern.permute.xlu0 0
    %1468 = vperm.xlu0 %1467, %v1214
    %v1469 = vpop.permute.xlu0 %1468
    %1472 = vset.pattern.permute.xlu0 0
    %1473 = vperm.xlu0 %1472, %v1215
    %v1474 = vpop.permute.xlu0 %1473
    %1477 = vset.pattern.permute.xlu0 0
    %1478 = vperm.xlu0 %1477, %v1216
    %v1479 = vpop.permute.xlu0 %1478
    %1482 = vset.pattern.permute.xlu0 0
    %1483 = vperm.xlu0 %1482, %v1217
    %v1484 = vpop.permute.xlu0 %1483
    %1487 = vset.pattern.permute.xlu0 0
    %1488 = vperm.xlu0 %1487, %v1218
    %v1489 = vpop.permute.xlu0 %1488
    %1492 = vset.pattern.permute.xlu0 0
    %1493 = vperm.xlu0 %1492, %v1219
    %v1494 = vpop.permute.xlu0 %1493
    %1497 = vset.pattern.permute.xlu0 0
    %1498 = vperm.xlu0 %1497, %v1220
    %v1499 = vpop.permute.xlu0 %1498
    %1502 = vset.pattern.permute.xlu0 0
    %1503 = vperm.xlu0 %1502, %v1221
    %v1504 = vpop.permute.xlu0 %1503
    %1507 = vset.pattern.permute.xlu0 0
    %1508 = vperm.xlu0 %1507, %v1222
    %v1509 = vpop.permute.xlu0 %1508
    %1512 = vset.pattern.permute.xlu0 0
    %1513 = vperm.xlu0 %1512, %v1223
    %v1514 = vpop.permute.xlu0 %1513
    %1517 = vset.pattern.permute.xlu0 0
    %1518 = vperm.xlu0 %1517, %v1224
    %v1519 = vpop.permute.xlu0 %1518
    %1522 = vset.pattern.permute.xlu0 0
    %1523 = vperm.xlu0 %1522, %v1225
    %v1524 = vpop.permute.xlu0 %1523
    %1527 = vset.pattern.permute.xlu0 0
    %1528 = vperm.xlu0 %1527, %v1226
    %v1529 = vpop.permute.xlu0 %1528
    %1532 = vset.pattern.permute.xlu0 0
    %1533 = vperm.xlu0 %1532, %v1227
    %v1534 = vpop.permute.xlu0 %1533
    %1537 = vset.pattern.permute.xlu0 0
    %1538 = vperm.xlu0 %1537, %v1228
    %v1539 = vpop.permute.xlu0 %1538
    %1542 = vset.pattern.permute.xlu0 0
    %1543 = vperm.xlu0 %1542, %v1229
    %v1544 = vpop.permute.xlu0 %1543
    %1547 = vset.pattern.permute.xlu0 0
    %1548 = vperm.xlu0 %1547, %v1230
    %v1549 = vpop.permute.xlu0 %1548
    %v1551 = vmul.f32 %v1103, %v1234
    %v1552 = vmul.f32 %v1104, %v1239
    %v1553 = vmul.f32 %v1105, %v1244
    %v1554 = vmul.f32 %v1106, %v1249
    %v1555 = vmul.f32 %v1107, %v1254
    %v1556 = vmul.f32 %v1108, %v1259
    %v1557 = vmul.f32 %v1109, %v1264
    %v1558 = vmul.f32 %v1110, %v1269
    %v1559 = vmul.f32 %v1111, %v1274
    %v1560 = vmul.f32 %v1112, %v1279
    %v1561 = vmul.f32 %v1113, %v1284
    %v1562 = vmul.f32 %v1114, %v1289
    %v1563 = vmul.f32 %v1115, %v1294
    %v1564 = vmul.f32 %v1116, %v1299
    %v1565 = vmul.f32 %v1117, %v1304
    %v1566 = vmul.f32 %v1118, %v1309
    %v1567 = vmul.f32 %v1119, %v1314
    %v1568 = vmul.f32 %v1120, %v1319
    %v1569 = vmul.f32 %v1121, %v1324
    %v1570 = vmul.f32 %v1122, %v1329
    %v1571 = vmul.f32 %v1123, %v1334
    %v1572 = vmul.f32 %v1124, %v1339
    %v1573 = vmul.f32 %v1125, %v1344
    %v1574 = vmul.f32 %v1126, %v1349
    %v1575 = vmul.f32 %v1127, %v1354
    %v1576 = vmul.f32 %v1128, %v1359
    %v1577 = vmul.f32 %v1129, %v1364
    %v1578 = vmul.f32 %v1130, %v1369
    %v1579 = vmul.f32 %v1131, %v1374
    %v1580 = vmul.f32 %v1132, %v1379
    %v1581 = vmul.f32 %v1133, %v1384
    %v1582 = vmul.f32 %v1134, %v1389
    %v1583 = vmul.f32 %v1135, %v1394
    %v1584 = vmul.f32 %v1136, %v1399
    %v1585 = vmul.f32 %v1137, %v1404
    %v1586 = vmul.f32 %v1138, %v1409
    %v1587 = vmul.f32 %v1139, %v1414
    %v1588 = vmul.f32 %v1140, %v1419
    %v1589 = vmul.f32 %v1141, %v1424
    %v1590 = vmul.f32 %v1142, %v1429
    %v1591 = vmul.f32 %v1143, %v1434
    %v1592 = vmul.f32 %v1144, %v1439
    %v1593 = vmul.f32 %v1145, %v1444
    %v1594 = vmul.f32 %v1146, %v1449
    %v1595 = vmul.f32 %v1147, %v1454
    %v1596 = vmul.f32 %v1148, %v1459
    %v1597 = vmul.f32 %v1149, %v1464
    %v1598 = vmul.f32 %v1150, %v1469
    %v1599 = vmul.f32 %v1151, %v1474
    %v1600 = vmul.f32 %v1152, %v1479
    %v1601 = vmul.f32 %v1153, %v1484
    %v1602 = vmul.f32 %v1154, %v1489
    %v1603 = vmul.f32 %v1155, %v1494
    %v1604 = vmul.f32 %v1156, %v1499
    %v1605 = vmul.f32 %v1157, %v1504
    %v1606 = vmul.f32 %v1158, %v1509
    %v1607 = vmul.f32 %v1159, %v1514
    %v1608 = vmul.f32 %v1160, %v1519
    %v1609 = vmul.f32 %v1161, %v1524
    %v1610 = vmul.f32 %v1162, %v1529
    %v1611 = vmul.f32 %v1163, %v1534
    %v1612 = vmul.f32 %v1164, %v1539
    %v1613 = vmul.f32 %v1165, %v1544
    %v1614 = vmul.f32 %v1166, %v1549
    %v1615 = vmax.f32 %v1551, %v1552
    %v1616 = vrot.slane %v1615, 4
    %v1617 = vmax.f32 %v1615, %v1616
    %v1618 = vrot.slane %v1617, 2
    %v1619 = vmax.f32 %v1617, %v1618
    %v1620 = vrot.slane %v1619, 1
    %v1621 = vmax.f32 %v1619, %v1620
    %v1622 = vmax.f32 %v1553, %v1554
    %v1623 = vrot.slane %v1622, 4
    %v1624 = vmax.f32 %v1622, %v1623
    %v1625 = vrot.slane %v1624, 2
    %v1626 = vmax.f32 %v1624, %v1625
    %v1627 = vrot.slane %v1626, 1
    %v1628 = vmax.f32 %v1626, %v1627
    %v1629 = vmax.f32 %v1555, %v1556
    %v1630 = vrot.slane %v1629, 4
    %v1631 = vmax.f32 %v1629, %v1630
    %v1632 = vrot.slane %v1631, 2
    %v1633 = vmax.f32 %v1631, %v1632
    %v1634 = vrot.slane %v1633, 1
    %v1635 = vmax.f32 %v1633, %v1634
    %v1636 = vmax.f32 %v1557, %v1558
    %v1637 = vrot.slane %v1636, 4
    %v1638 = vmax.f32 %v1636, %v1637
    %v1639 = vrot.slane %v1638, 2
    %v1640 = vmax.f32 %v1638, %v1639
    %v1641 = vrot.slane %v1640, 1
    %v1642 = vmax.f32 %v1640, %v1641
    %v1643 = vmax.f32 %v1559, %v1560
    %v1644 = vrot.slane %v1643, 4
    %v1645 = vmax.f32 %v1643, %v1644
    %v1646 = vrot.slane %v1645, 2
    %v1647 = vmax.f32 %v1645, %v1646
    %v1648 = vrot.slane %v1647, 1
    %v1649 = vmax.f32 %v1647, %v1648
    %v1650 = vmax.f32 %v1561, %v1562
    %v1651 = vrot.slane %v1650, 4
    %v1652 = vmax.f32 %v1650, %v1651
    %v1653 = vrot.slane %v1652, 2
    %v1654 = vmax.f32 %v1652, %v1653
    %v1655 = vrot.slane %v1654, 1
    %v1656 = vmax.f32 %v1654, %v1655
    %v1657 = vmax.f32 %v1563, %v1564
    %v1658 = vrot.slane %v1657, 4
    %v1659 = vmax.f32 %v1657, %v1658
    %v1660 = vrot.slane %v1659, 2
    %v1661 = vmax.f32 %v1659, %v1660
    %v1662 = vrot.slane %v1661, 1
    %v1663 = vmax.f32 %v1661, %v1662
    %v1664 = vmax.f32 %v1565, %v1566
    %v1665 = vrot.slane %v1664, 4
    %v1666 = vmax.f32 %v1664, %v1665
    %v1667 = vrot.slane %v1666, 2
    %v1668 = vmax.f32 %v1666, %v1667
    %v1669 = vrot.slane %v1668, 1
    %v1670 = vmax.f32 %v1668, %v1669
    %v1671 = vmax.f32 %v1567, %v1568
    %v1672 = vrot.slane %v1671, 4
    %v1673 = vmax.f32 %v1671, %v1672
    %v1674 = vrot.slane %v1673, 2
    %v1675 = vmax.f32 %v1673, %v1674
    %v1676 = vrot.slane %v1675, 1
    %v1677 = vmax.f32 %v1675, %v1676
    %v1678 = vmax.f32 %v1569, %v1570
    %v1679 = vrot.slane %v1678, 4
    %v1680 = vmax.f32 %v1678, %v1679
    %v1681 = vrot.slane %v1680, 2
    %v1682 = vmax.f32 %v1680, %v1681
    %v1683 = vrot.slane %v1682, 1
    %v1684 = vmax.f32 %v1682, %v1683
    %v1685 = vmax.f32 %v1571, %v1572
    %v1686 = vrot.slane %v1685, 4
    %v1687 = vmax.f32 %v1685, %v1686
    %v1688 = vrot.slane %v1687, 2
    %v1689 = vmax.f32 %v1687, %v1688
    %v1690 = vrot.slane %v1689, 1
    %v1691 = vmax.f32 %v1689, %v1690
    %v1692 = vmax.f32 %v1573, %v1574
    %v1693 = vrot.slane %v1692, 4
    %v1694 = vmax.f32 %v1692, %v1693
    %v1695 = vrot.slane %v1694, 2
    %v1696 = vmax.f32 %v1694, %v1695
    %v1697 = vrot.slane %v1696, 1
    %v1698 = vmax.f32 %v1696, %v1697
    %v1699 = vmax.f32 %v1575, %v1576
    %v1700 = vrot.slane %v1699, 4
    %v1701 = vmax.f32 %v1699, %v1700
    %v1702 = vrot.slane %v1701, 2
    %v1703 = vmax.f32 %v1701, %v1702
    %v1704 = vrot.slane %v1703, 1
    %v1705 = vmax.f32 %v1703, %v1704
    %v1706 = vmax.f32 %v1577, %v1578
    %v1707 = vrot.slane %v1706, 4
    %v1708 = vmax.f32 %v1706, %v1707
    %v1709 = vrot.slane %v1708, 2
    %v1710 = vmax.f32 %v1708, %v1709
    %v1711 = vrot.slane %v1710, 1
    %v1712 = vmax.f32 %v1710, %v1711
    %v1713 = vmax.f32 %v1579, %v1580
    %v1714 = vrot.slane %v1713, 4
    %v1715 = vmax.f32 %v1713, %v1714
    %v1716 = vrot.slane %v1715, 2
    %v1717 = vmax.f32 %v1715, %v1716
    %v1718 = vrot.slane %v1717, 1
    %v1719 = vmax.f32 %v1717, %v1718
    %v1720 = vmax.f32 %v1581, %v1582
    %v1721 = vrot.slane %v1720, 4
    %v1722 = vmax.f32 %v1720, %v1721
    %v1723 = vrot.slane %v1722, 2
    %v1724 = vmax.f32 %v1722, %v1723
    %v1725 = vrot.slane %v1724, 1
    %v1726 = vmax.f32 %v1724, %v1725
    %v1727 = vmax.f32 %v1583, %v1584
    %v1728 = vrot.slane %v1727, 4
    %v1729 = vmax.f32 %v1727, %v1728
    %v1730 = vrot.slane %v1729, 2
    %v1731 = vmax.f32 %v1729, %v1730
    %v1732 = vrot.slane %v1731, 1
    %v1733 = vmax.f32 %v1731, %v1732
    %v1734 = vmax.f32 %v1585, %v1586
    %v1735 = vrot.slane %v1734, 4
    %v1736 = vmax.f32 %v1734, %v1735
    %v1737 = vrot.slane %v1736, 2
    %v1738 = vmax.f32 %v1736, %v1737
    %v1739 = vrot.slane %v1738, 1
    %v1740 = vmax.f32 %v1738, %v1739
    %v1741 = vmax.f32 %v1587, %v1588
    %v1742 = vrot.slane %v1741, 4
    %v1743 = vmax.f32 %v1741, %v1742
    %v1744 = vrot.slane %v1743, 2
    %v1745 = vmax.f32 %v1743, %v1744
    %v1746 = vrot.slane %v1745, 1
    %v1747 = vmax.f32 %v1745, %v1746
    %v1748 = vmax.f32 %v1589, %v1590
    %v1749 = vrot.slane %v1748, 4
    %v1750 = vmax.f32 %v1748, %v1749
    %v1751 = vrot.slane %v1750, 2
    %v1752 = vmax.f32 %v1750, %v1751
    %v1753 = vrot.slane %v1752, 1
    %v1754 = vmax.f32 %v1752, %v1753
    %v1755 = vmax.f32 %v1591, %v1592
    %v1756 = vrot.slane %v1755, 4
    %v1757 = vmax.f32 %v1755, %v1756
    %v1758 = vrot.slane %v1757, 2
    %v1759 = vmax.f32 %v1757, %v1758
    %v1760 = vrot.slane %v1759, 1
    %v1761 = vmax.f32 %v1759, %v1760
    %v1762 = vmax.f32 %v1593, %v1594
    %v1763 = vrot.slane %v1762, 4
    %v1764 = vmax.f32 %v1762, %v1763
    %v1765 = vrot.slane %v1764, 2
    %v1766 = vmax.f32 %v1764, %v1765
    %v1767 = vrot.slane %v1766, 1
    %v1768 = vmax.f32 %v1766, %v1767
    %v1769 = vmax.f32 %v1595, %v1596
    %v1770 = vrot.slane %v1769, 4
    %v1771 = vmax.f32 %v1769, %v1770
    %v1772 = vrot.slane %v1771, 2
    %v1773 = vmax.f32 %v1771, %v1772
    %v1774 = vrot.slane %v1773, 1
    %v1775 = vmax.f32 %v1773, %v1774
    %v1776 = vmax.f32 %v1597, %v1598
    %v1777 = vrot.slane %v1776, 4
    %v1778 = vmax.f32 %v1776, %v1777
    %v1779 = vrot.slane %v1778, 2
    %v1780 = vmax.f32 %v1778, %v1779
    %v1781 = vrot.slane %v1780, 1
    %v1782 = vmax.f32 %v1780, %v1781
    %v1783 = vmax.f32 %v1599, %v1600
    %v1784 = vrot.slane %v1783, 4
    %v1785 = vmax.f32 %v1783, %v1784
    %v1786 = vrot.slane %v1785, 2
    %v1787 = vmax.f32 %v1785, %v1786
    %v1788 = vrot.slane %v1787, 1
    %v1789 = vmax.f32 %v1787, %v1788
    %v1790 = vmax.f32 %v1601, %v1602
    %v1791 = vrot.slane %v1790, 4
    %v1792 = vmax.f32 %v1790, %v1791
    %v1793 = vrot.slane %v1792, 2
    %v1794 = vmax.f32 %v1792, %v1793
    %v1795 = vrot.slane %v1794, 1
    %v1796 = vmax.f32 %v1794, %v1795
    %v1797 = vmax.f32 %v1603, %v1604
    %v1798 = vrot.slane %v1797, 4
    %v1799 = vmax.f32 %v1797, %v1798
    %v1800 = vrot.slane %v1799, 2
    %v1801 = vmax.f32 %v1799, %v1800
    %v1802 = vrot.slane %v1801, 1
    %v1803 = vmax.f32 %v1801, %v1802
    %v1804 = vmax.f32 %v1605, %v1606
    %v1805 = vrot.slane %v1804, 4
    %v1806 = vmax.f32 %v1804, %v1805
    %v1807 = vrot.slane %v1806, 2
    %v1808 = vmax.f32 %v1806, %v1807
    %v1809 = vrot.slane %v1808, 1
    %v1810 = vmax.f32 %v1808, %v1809
    %v1811 = vmax.f32 %v1607, %v1608
    %v1812 = vrot.slane %v1811, 4
    %v1813 = vmax.f32 %v1811, %v1812
    %v1814 = vrot.slane %v1813, 2
    %v1815 = vmax.f32 %v1813, %v1814
    %v1816 = vrot.slane %v1815, 1
    %v1817 = vmax.f32 %v1815, %v1816
    %v1818 = vmax.f32 %v1609, %v1610
    %v1819 = vrot.slane %v1818, 4
    %v1820 = vmax.f32 %v1818, %v1819
    %v1821 = vrot.slane %v1820, 2
    %v1822 = vmax.f32 %v1820, %v1821
    %v1823 = vrot.slane %v1822, 1
    %v1824 = vmax.f32 %v1822, %v1823
    %v1825 = vmax.f32 %v1611, %v1612
    %v1826 = vrot.slane %v1825, 4
    %v1827 = vmax.f32 %v1825, %v1826
    %v1828 = vrot.slane %v1827, 2
    %v1829 = vmax.f32 %v1827, %v1828
    %v1830 = vrot.slane %v1829, 1
    %v1831 = vmax.f32 %v1829, %v1830
    %v1832 = vmax.f32 %v1613, %v1614
    %v1833 = vrot.slane %v1832, 4
    %v1834 = vmax.f32 %v1832, %v1833
    %v1835 = vrot.slane %v1834, 2
    %v1836 = vmax.f32 %v1834, %v1835
    %v1837 = vrot.slane %v1836, 1
    %v1838 = vmax.f32 %v1836, %v1837
    %vm1871 = vcmask 1041409
    %v1872 = vsel %vm1871, %v1628, %v1621
    %vm1873 = vcmask 1042434
    %v1874 = vsel %vm1873, %v1635, %v1872
    %vm1875 = vcmask 1043459
    %v1876 = vsel %vm1875, %v1642, %v1874
    %vm1877 = vcmask 1044484
    %v1878 = vsel %vm1877, %v1649, %v1876
    %vm1879 = vcmask 1045509
    %v1880 = vsel %vm1879, %v1656, %v1878
    %vm1881 = vcmask 1046534
    %v1882 = vsel %vm1881, %v1663, %v1880
    %vm1883 = vcmask 1047559
    %v1884 = vsel %vm1883, %v1670, %v1882
    %v1885 = vsel %vm1871, %v1684, %v1677
    %v1886 = vsel %vm1873, %v1691, %v1885
    %v1887 = vsel %vm1875, %v1698, %v1886
    %v1888 = vsel %vm1877, %v1705, %v1887
    %v1889 = vsel %vm1879, %v1712, %v1888
    %v1890 = vsel %vm1881, %v1719, %v1889
    %v1891 = vsel %vm1883, %v1726, %v1890
    %v1892 = vsel %vm1871, %v1740, %v1733
    %v1893 = vsel %vm1873, %v1747, %v1892
    %v1894 = vsel %vm1875, %v1754, %v1893
    %v1895 = vsel %vm1877, %v1761, %v1894
    %v1896 = vsel %vm1879, %v1768, %v1895
    %v1897 = vsel %vm1881, %v1775, %v1896
    %v1898 = vsel %vm1883, %v1782, %v1897
    %v1899 = vsel %vm1871, %v1796, %v1789
    %v1900 = vsel %vm1873, %v1803, %v1899
    %v1901 = vsel %vm1875, %v1810, %v1900
    %v1902 = vsel %vm1877, %v1817, %v1901
    %v1903 = vsel %vm1879, %v1824, %v1902
    %v1904 = vsel %vm1881, %v1831, %v1903
    %v1905 = vsel %vm1883, %v1838, %v1904
    %1910 = vst [vmem:[#allocation2] sm:$0xff] %v1884
    %1911 = vst [vmem:[#allocation2 + $0x8] sm:$0xff] %v1891
    %1912 = vst [vmem:[#allocation2 + $0x10] sm:$0xff] %v1898
    %1913 = vst [vmem:[#allocation2 + $0x18] sm:$0xff] %v1905
    // Predicated region
    $region26: #{sa_module_forward.1} parent=1 // pred_check
      _
    $region27: #{sa_module_forward.1} parent=1 // pred_check_branch
      %1915 = sbr.rel (0) target = $region29
    $region28: #{sa_module_forward.1} parent=1 // pred_region
      %s1917 = ssub.s32 512, 512
      %1918 = vsyncadd [#allocation3], %s1917
      %s1919 = sshll.u32 [#allocation2], 4
      %s1920 = int_to_ptr.vmem [resolvable:$true] %s1919
      %1925 = dma.vmem_to_hbm [thread:$0]  %s1920, 512, %s6, [#allocation3], 128, 128, 8
    $region29: #{sa_module_forward.1} parent=1 // pred_fallthru
      _
    // Predicated region
    $region30: #{sa_module_forward.1} parent=1 // pred_check
      _
    $region31: #{sa_module_forward.1} parent=1 // pred_check_branch
      %1927 = sbr.rel (0) target = $region33
    $region32: #{sa_module_forward.1} parent=1 // pred_region
      %1928 = dma.done [#allocation3], 512
    $region33: #{sa_module_forward.1} parent=1 // pred_fallthru
      _
    %1929 = vsyncpa [#allocation3], 1

</llo_original>
